<compile_context>
chip_gen: v5e
topology: v5e:2x2
jax: 0.10.0
libtpu: 0.0.40
codegen_flags: <defaults>
</compile_context>

<pallas_src>
import functools
import math

import jax
import jax.numpy as jnp
from jax import lax
from jax.experimental import pallas as pl
from jax.experimental.pallas import tpu as pltpu


# ----------------------------- fused Pallas kernel ---------------------------


def _encoder_kernel(x_ref, qw_ref, kw_ref, vw_ref, ow_ref, w1_ref, w2_ref,
                    vecs_ref, b1_ref, lnf_ref, o_ref, x_sc, *, nhead, eps):
    """One grid step = (one batch tile) x (one encoder layer).

    vecs_ref rows: [q_b(scaled), k_b, v_b, out_b, l2_b, ln1_g, ln1_b, ln2_g, ln2_b]
    """
    layer = pl.program_id(1)
    num_layers = pl.num_programs(1)

    B, S, E = x_ref.shape
    M = B * S
    H = nhead
    Dh = E // H

    def vec(i):                       # (1, E) f32 per-layer vector parameter
        return vecs_ref[0, i:i + 1, :]

    def layernorm(v, g, b):
        # PyTorch LayerNorm (biased variance) over the last dim, f32 stats.
        mu = jnp.mean(v, axis=-1, keepdims=True)
        var = jnp.mean((v - mu) ** 2, axis=-1, keepdims=True)
        return (v - mu) * lax.rsqrt(var + eps) * g + b

    @pl.when(layer == 0)
    def _():
        # Load the batch tile once; it stays resident in the f32 scratch.
        x_sc[...] = x_ref[...].reshape(M, E).astype(jnp.float32)

    x = x_sc[...]                                   # (M, E) f32 residual stream
    xb = x.astype(jnp.bfloat16)

    # ---- self attention (1/sqrt(Dh) already folded into qw / q_b) ----
    q = jnp.dot(xb, qw_ref[0], preferred_element_type=jnp.float32) + vec(0)
    k = jnp.dot(xb, kw_ref[0], preferred_element_type=jnp.float32) + vec(1)
    v = jnp.dot(xb, vw_ref[0], preferred_element_type=jnp.float32) + vec(2)

    q3 = q.reshape(B, S, E)
    k3 = k.reshape(B, S, E)
    v3 = v.reshape(B, S, E)

    head_outs = []
    for h in range(H):                              # H is a small static constant
        sl = slice(h * Dh, (h + 1) * Dh)
        qh = q3[:, :, sl].astype(jnp.bfloat16)
        kh = k3[:, :, sl].astype(jnp.bfloat16)
        vh = v3[:, :, sl].astype(jnp.bfloat16)
        s = jnp.einsum('bqd,bkd->bqk', qh, kh,
                       preferred_element_type=jnp.float32)
        s = s - jnp.max(s, axis=-1, keepdims=True)
        p = jnp.exp(s)
        p = p * pl.reciprocal(jnp.sum(p, axis=-1, keepdims=True), approx=True)
        head_outs.append(jnp.einsum('bqk,bkd->bqd', p.astype(jnp.bfloat16), vh,
                                    preferred_element_type=jnp.float32))
    attn = jnp.concatenate(head_outs, axis=-1).reshape(M, E)

    y = jnp.dot(attn.astype(jnp.bfloat16), ow_ref[0],
                preferred_element_type=jnp.float32) + vec(3)
    x = layernorm(x + y, vec(5), vec(6))            # post-norm (norm1)

    # ---- feed forward (ReLU); dropout layers are identity (eval semantics) ----
    # TODO(synk): training-mode dropout (stochastic) is not reproduced.
    h1 = jnp.dot(x.astype(jnp.bfloat16), w1_ref[0],
                 preferred_element_type=jnp.float32) + b1_ref[0]
    h1 = jnp.maximum(h1, 0.0)
    ff = jnp.dot(h1.astype(jnp.bfloat16), w2_ref[0],
                 preferred_element_type=jnp.float32) + vec(4)
    x = layernorm(x + ff, vec(7), vec(8))           # post-norm (norm2)

    x_sc[...] = x

    @pl.when(layer == num_layers - 1)
    def _():
        # Final TransformerEncoder LayerNorm, then write the batch tile out.
        xf = layernorm(x, lnf_ref[0:1, :], lnf_ref[1:2, :])
        o_ref[...] = xf.reshape(B, S, E).astype(o_ref.dtype)


# ------------------------------ parameter packing -----------------------------


def _pack_params(layer_params, final_params, d_model, nhead):
    E = d_model
    Dh = E // nhead
    scale = 1.0 / math.sqrt(Dh)

    qw, kw, vw, ow, w1, w2, vecs, b1 = [], [], [], [], [], [], [], []
    for p in layer_params:
        in_w, in_b = p["in_w"], p["in_b"]           # (E, 3E), (3E,)  [x @ W layout]
        qw.append(in_w[:, :E] * scale)              # fold 1/sqrt(Dh) into Q proj
        kw.append(in_w[:, E:2 * E])
        vw.append(in_w[:, 2 * E:])
        ow.append(p["out_w"])
        w1.append(p["l1_w"])
        w2.append(p["l2_w"])
        b1.append(p["l1_b"])
        vecs.append(jnp.stack([
            in_b[:E] * scale, in_b[E:2 * E], in_b[2 * E:], p["out_b"], p["l2_b"],
            p["ln1_g"], p["ln1_b"], p["ln2_g"], p["ln2_b"]]))

    bf16, f32 = jnp.bfloat16, jnp.float32
    return dict(
        q_w=jnp.stack(qw).astype(bf16),             # (L, E, E)
        k_w=jnp.stack(kw).astype(bf16),             # (L, E, E)
        v_w=jnp.stack(vw).astype(bf16),             # (L, E, E)
        o_w=jnp.stack(ow).astype(bf16),             # (L, E, E)
        w1=jnp.stack(w1).astype(bf16),              # (L, E, F)
        w2=jnp.stack(w2).astype(bf16),              # (L, F, E)
        vecs=jnp.stack(vecs).astype(f32),           # (L, 9, E)
        b1=jnp.stack(b1)[:, None, :].astype(f32),   # (L, 1, F)
        lnf=jnp.stack([final_params["lnf_g"],
                       final_params["lnf_b"]]).astype(f32),   # (2, E)
    )


# ------------------------------ Pallas wrapper --------------------------------


def transformer_forward(src, layer_params, final_params, nhead, eps=1e-5):
    # src: (S, N, E) -- PyTorch batch_first=False convention.
    S, N, E = src.shape
    L = len(layer_params)
    F = layer_params[0]["l1_w"].shape[1]

    pk = _pack_params(layer_params, final_params, E, nhead)

    # Fold several batch elements into the matmul M dimension (target ~256 rows).
    B_TILE = max(1, min(N, pl.cdiv(256, S)))
    n_tiles = pl.cdiv(N, B_TILE)
    N_pad = n_tiles * B_TILE

    # TODO(synk): the (S,N,E)<->(N,S,E) transposes are wrapper-side HBM traffic;
    # a batch-major caller could supply/consume (N,S,E) directly and skip them.
    x = jnp.transpose(src, (1, 0, 2))
    if N_pad != N:
        x = jnp.pad(x, ((0, N_pad - N), (0, 0), (0, 0)))

    def w_spec(shape):
        return pl.BlockSpec((1,) + shape, lambda b, l: (l, 0, 0))

    grid_spec = pltpu.PrefetchScalarGridSpec(
        num_scalar_prefetch=0,
        grid=(n_tiles, L),
        in_specs=[
            pl.BlockSpec((B_TILE, S, E), lambda b, l: (b, 0, 0)),   # x
            w_spec((E, E)),                                         # q_w
            w_spec((E, E)),                                         # k_w
            w_spec((E, E)),                                         # v_w
            w_spec((E, E)),                                         # out_w
            w_spec((E, F)),                                         # ffn w1
            w_spec((F, E)),                                         # ffn w2
            w_spec((9, E)),                                         # packed E-vectors
            w_spec((1, F)),                                         # ffn b1
            pl.BlockSpec((2, E), lambda b, l: (0, 0)),              # final LN g/b
        ],
        out_specs=pl.BlockSpec((B_TILE, S, E), lambda b, l: (b, 0, 0)),
        scratch_shapes=[pltpu.VMEM((B_TILE * S, E), jnp.float32)],  # residual stream
    )

    out = pl.pallas_call(
        functools.partial(_encoder_kernel, nhead=nhead, eps=eps),
        out_shape=jax.ShapeDtypeStruct((N_pad, S, E), src.dtype),
        grid_spec=grid_spec,
        compiler_params=pltpu.CompilerParams(
            dimension_semantics=("parallel", "arbitrary"),
            vmem_limit_bytes=48 * 1024 * 1024),
    )(x, pk["q_w"], pk["k_w"], pk["v_w"], pk["o_w"], pk["w1"], pk["w2"],
      pk["vecs"], pk["b1"], pk["lnf"])

    return jnp.transpose(out[:N], (1, 0, 2))        # back to (S, N, E)


# ------------------------------ model parameters ------------------------------


def xavier_uniform(key, fan_in, fan_out):
    limit = math.sqrt(6.0 / (fan_in + fan_out))
    return jax.random.uniform(key, (fan_in, fan_out), jnp.float32, -limit, limit)


def init_transformer_params(key, d_model, nhead, num_layers, dim_feedforward):
    # NOTE: weights are stored (in, out) so the kernel computes x @ W.  Loading
    # real PyTorch nn.Linear / in_proj weights (stored (out, in)) requires a
    # transpose at parameter-prep time.
    params = []
    E, F = d_model, dim_feedforward
    for _ in range(num_layers):
        key, k1, k2, k3, k4 = jax.random.split(key, 5)
        params.append({
            "in_w": xavier_uniform(k1, E, 3 * E),
            "in_b": jnp.zeros((3 * E,), jnp.float32),
            "out_w": xavier_uniform(k2, E, E),
            "out_b": jnp.zeros((E,), jnp.float32),
            "l1_w": xavier_uniform(k3, E, F),
            "l1_b": jnp.zeros((F,), jnp.float32),
            "l2_w": xavier_uniform(k4, F, E),
            "l2_b": jnp.zeros((E,), jnp.float32),
            "ln1_g": jnp.ones((E,), jnp.float32),
            "ln1_b": jnp.zeros((E,), jnp.float32),
            "ln2_g": jnp.ones((E,), jnp.float32),
            "ln2_b": jnp.zeros((E,), jnp.float32),
        })
    final = {"lnf_g": jnp.ones((E,), jnp.float32),
             "lnf_b": jnp.zeros((E,), jnp.float32)}
    return params, final


# ----------------------------------- main --------------------------------------

if __name__ == "__main__":
    d_model = 32
    nhead = 4
    num_layers = 2
    dim_feedforward = 64
    seq_len = 8
    batch = 2

    key = jax.random.PRNGKey(0)
    key, pkey, xkey = jax.random.split(key, 3)

    layer_params, final_params = init_transformer_params(
        pkey, d_model, nhead, num_layers, dim_feedforward)

    # (seq_len, batch, d_model) == PyTorch batch_first=False convention.
    src = jax.random.normal(xkey, (seq_len, batch, d_model), jnp.float32)

    fwd = jax.jit(transformer_forward, static_argnums=(3,))
    out = jax.block_until_ready(fwd(src, layer_params, final_params, nhead))

    assert out.shape == (seq_len, batch, d_model)
    assert bool(jnp.all(jnp.isfinite(out)))
    print("KERNEL_OK")
</pallas_src>

<mosaic_0001>
module attributes {stable_mosaic.version = 11 : i64} {
  func.func @_encoder_kernel(%arg0: i32, %arg1: i32, %arg2: memref<2x8x32xf32, #tpu.memory_space<vmem>>, %arg3: memref<1x32x32xbf16, #tpu.memory_space<vmem>>, %arg4: memref<1x32x32xbf16, #tpu.memory_space<vmem>>, %arg5: memref<1x32x32xbf16, #tpu.memory_space<vmem>>, %arg6: memref<1x32x32xbf16, #tpu.memory_space<vmem>>, %arg7: memref<1x32x64xbf16, #tpu.memory_space<vmem>>, %arg8: memref<1x64x32xbf16, #tpu.memory_space<vmem>>, %arg9: memref<1x9x32xf32, #tpu.memory_space<vmem>>, %arg10: memref<1x1x64xf32, #tpu.memory_space<vmem>>, %arg11: memref<2x32xf32, #tpu.memory_space<vmem>>, %arg12: memref<2x8x32xf32, #tpu.memory_space<vmem>>, %arg13: memref<16x32xf32, #tpu.memory_space<vmem>>) attributes {dimension_semantics = [#tpu.dimension_semantics<parallel>, #tpu.dimension_semantics<arbitrary>], iteration_bounds = array<i64: 1, 2>, scalar_prefetch = 0 : i64, scratch_operands = 1 : i64, tpu.core_type = #tpu.core_type<tc>, window_params = [{transform_indices = @transform_0, window_bounds = array<i64: 2, 8, 32>}, {transform_indices = @transform_1, window_bounds = array<i64: 1, 32, 32>}, {transform_indices = @transform_2, window_bounds = array<i64: 1, 32, 32>}, {transform_indices = @transform_3, window_bounds = array<i64: 1, 32, 32>}, {transform_indices = @transform_4, window_bounds = array<i64: 1, 32, 32>}, {transform_indices = @transform_5, window_bounds = array<i64: 1, 32, 64>}, {transform_indices = @transform_6, window_bounds = array<i64: 1, 64, 32>}, {transform_indices = @transform_7, window_bounds = array<i64: 1, 9, 32>}, {transform_indices = @transform_8, window_bounds = array<i64: 1, 1, 64>}, {pipeline_mode = #tpu.pipeline_mode<synchronous>, transform_indices = @transform_9, window_bounds = array<i64: 2, 32>}, {transform_indices = @transform_10, window_bounds = array<i64: 2, 8, 32>}]} {
    %c0_i32 = arith.constant 0 : i32
    %0 = arith.cmpi eq, %arg1, %c0_i32 : i32
    %1 = arith.extui %0 : i1 to i32
    %c0_i32_0 = arith.constant 0 : i32
    %2 = arith.cmpi ne, %1, %c0_i32_0 : i32
    scf.if %2 {
      %c0_77 = arith.constant 0 : index
      %c0_78 = arith.constant 0 : index
      %c0_79 = arith.constant 0 : index
      %191 = vector.load %arg2[%c0_77, %c0_78, %c0_79] : memref<2x8x32xf32, #tpu.memory_space<vmem>>, vector<2x8x32xf32>
      %192 = vector.shape_cast %191 : vector<2x8x32xf32> to vector<16x32xf32>
      %c0_80 = arith.constant 0 : index
      %c0_81 = arith.constant 0 : index
      %193 = vector.load %arg13[%c0_80, %c0_81] : memref<16x32xf32, #tpu.memory_space<vmem>>, vector<16x32xf32>
      tpu.vector_store %arg13[%c0_80, %c0_81], %192 {strides = array<i32>} : memref<16x32xf32, #tpu.memory_space<vmem>>, vector<16x32xf32>,
    } else {
    }
    %c0 = arith.constant 0 : index
    %c0_1 = arith.constant 0 : index
    %3 = vector.load %arg13[%c0, %c0_1] : memref<16x32xf32, #tpu.memory_space<vmem>>, vector<16x32xf32>
    %4 = arith.truncf %3 : vector<16x32xf32> to vector<16x32xbf16>
    %c0_2 = arith.constant 0 : index
    %c0_3 = arith.constant 0 : index
    %c0_4 = arith.constant 0 : index
    %5 = vector.load %arg3[%c0_2, %c0_3, %c0_4] : memref<1x32x32xbf16, #tpu.memory_space<vmem>>, vector<1x32x32xbf16>
    %6 = vector.shape_cast %5 : vector<1x32x32xbf16> to vector<32x32xbf16>
    %cst = arith.constant dense<0.000000e+00> : vector<16x32xf32>
    %7 = tpu.matmul %4, %6, %cst {dimension_numbers = #tpu.dot_dimension_numbers<[1], [0], [0], [1], [0, 0, 1, 1], [], []>} : vector<16x32xbf16>, vector<32x32xbf16>, vector<16x32xf32> -> vector<16x32xf32>
    %c0_5 = arith.constant 0 : index
    %c0_6 = arith.constant 0 : index
    %c0_7 = arith.constant 0 : index
    %8 = vector.load %arg9[%c0_5, %c0_6, %c0_7] : memref<1x9x32xf32, #tpu.memory_space<vmem>>, vector<1x1x32xf32>
    %9 = vector.shape_cast %8 : vector<1x1x32xf32> to vector<1x32xf32>
    %10 = vector.broadcast %9 : vector<1x32xf32> to vector<16x32xf32>
    %11 = arith.addf %7, %10 : vector<16x32xf32>
    %c0_8 = arith.constant 0 : index
    %c0_9 = arith.constant 0 : index
    %c0_10 = arith.constant 0 : index
    %12 = vector.load %arg4[%c0_8, %c0_9, %c0_10] : memref<1x32x32xbf16, #tpu.memory_space<vmem>>, vector<1x32x32xbf16>
    %13 = vector.shape_cast %12 : vector<1x32x32xbf16> to vector<32x32xbf16>
    %cst_11 = arith.constant dense<0.000000e+00> : vector<16x32xf32>
    %14 = tpu.matmul %4, %13, %cst_11 {dimension_numbers = #tpu.dot_dimension_numbers<[1], [0], [0], [1], [0, 0, 1, 1], [], []>} : vector<16x32xbf16>, vector<32x32xbf16>, vector<16x32xf32> -> vector<16x32xf32>
    %c0_12 = arith.constant 0 : index
    %c1 = arith.constant 1 : index
    %c0_13 = arith.constant 0 : index
    %15 = vector.load %arg9[%c0_12, %c1, %c0_13] : memref<1x9x32xf32, #tpu.memory_space<vmem>>, vector<1x1x32xf32>
    %16 = vector.shape_cast %15 : vector<1x1x32xf32> to vector<1x32xf32>
    %17 = vector.broadcast %16 : vector<1x32xf32> to vector<16x32xf32>
    %18 = arith.addf %14, %17 : vector<16x32xf32>
    %c0_14 = arith.constant 0 : index
    %c0_15 = arith.constant 0 : index
    %c0_16 = arith.constant 0 : index
    %19 = vector.load %arg5[%c0_14, %c0_15, %c0_16] : memref<1x32x32xbf16, #tpu.memory_space<vmem>>, vector<1x32x32xbf16>
    %20 = vector.shape_cast %19 : vector<1x32x32xbf16> to vector<32x32xbf16>
    %cst_17 = arith.constant dense<0.000000e+00> : vector<16x32xf32>
    %21 = tpu.matmul %4, %20, %cst_17 {dimension_numbers = #tpu.dot_dimension_numbers<[1], [0], [0], [1], [0, 0, 1, 1], [], []>} : vector<16x32xbf16>, vector<32x32xbf16>, vector<16x32xf32> -> vector<16x32xf32>
    %c0_18 = arith.constant 0 : index
    %c2 = arith.constant 2 : index
    %c0_19 = arith.constant 0 : index
    %22 = vector.load %arg9[%c0_18, %c2, %c0_19] : memref<1x9x32xf32, #tpu.memory_space<vmem>>, vector<1x1x32xf32>
    %23 = vector.shape_cast %22 : vector<1x1x32xf32> to vector<1x32xf32>
    %24 = vector.broadcast %23 : vector<1x32xf32> to vector<16x32xf32>
    %25 = arith.addf %21, %24 : vector<16x32xf32>
    %26 = vector.shape_cast %11 : vector<16x32xf32> to vector<2x8x32xf32>
    %27 = vector.shape_cast %18 : vector<16x32xf32> to vector<2x8x32xf32>
    %28 = vector.shape_cast %25 : vector<16x32xf32> to vector<2x8x32xf32>
    %29 = vector.extract_strided_slice %26 {offsets = [0, 0, 0], sizes = [2, 8, 8], strides = [1, 1, 1]} : vector<2x8x32xf32> to vector<2x8x8xf32>
    %30 = arith.truncf %29 : vector<2x8x8xf32> to vector<2x8x8xbf16>
    %31 = vector.extract_strided_slice %27 {offsets = [0, 0, 0], sizes = [2, 8, 8], strides = [1, 1, 1]} : vector<2x8x32xf32> to vector<2x8x8xf32>
    %32 = arith.truncf %31 : vector<2x8x8xf32> to vector<2x8x8xbf16>
    %33 = vector.extract_strided_slice %28 {offsets = [0, 0, 0], sizes = [2, 8, 8], strides = [1, 1, 1]} : vector<2x8x32xf32> to vector<2x8x8xf32>
    %34 = arith.truncf %33 : vector<2x8x8xf32> to vector<2x8x8xbf16>
    "tpu.trace_start"() <{level = 10 : i32, message = "bqd,bkd->bqk"}> : () -> ()
    %cst_20 = arith.constant dense<0.000000e+00> : vector<2x8x8xf32>
    %35 = tpu.matmul %30, %32, %cst_20 {dimension_numbers = #tpu.dot_dimension_numbers<[2], [2], [1], [1], [0, 0, 0, 1, 1, 1], [0], [0]>} : vector<2x8x8xbf16>, vector<2x8x8xbf16>, vector<2x8x8xf32> -> vector<2x8x8xf32>
    "tpu.trace_stop"() : () -> ()
    %cst_21 = arith.constant dense<0xFF800000> : vector<2x8xf32>
    %36 = vector.multi_reduction <maximumf>, %35, %cst_21 [2] : vector<2x8x8xf32> to vector<2x8xf32>
    %37 = vector.shape_cast %36 : vector<2x8xf32> to vector<2x8x1xf32>
    %38 = vector.broadcast %37 : vector<2x8x1xf32> to vector<2x8x8xf32>
    %39 = arith.subf %35, %38 : vector<2x8x8xf32>
    %40 = math.exp %39 : vector<2x8x8xf32>
    %cst_22 = arith.constant dense<0.000000e+00> : vector<2x8xf32>
    %41 = vector.multi_reduction <add>, %40, %cst_22 [2] : vector<2x8x8xf32> to vector<2x8xf32>
    %42 = vector.shape_cast %41 : vector<2x8xf32> to vector<2x8x1xf32>
    %43 = tpu.reciprocal %42 {approx = true} : vector<2x8x1xf32> -> vector<2x8x1xf32>
    %44 = vector.broadcast %43 : vector<2x8x1xf32> to vector<2x8x8xf32>
    %45 = arith.mulf %40, %44 : vector<2x8x8xf32>
    %46 = arith.truncf %45 : vector<2x8x8xf32> to vector<2x8x8xbf16>
    "tpu.trace_start"() <{level = 10 : i32, message = "bqk,bkd->bqd"}> : () -> ()
    %cst_23 = arith.constant dense<0.000000e+00> : vector<2x8x8xf32>
    %47 = tpu.matmul %46, %34, %cst_23 {dimension_numbers = #tpu.dot_dimension_numbers<[2], [1], [1], [2], [0, 0, 0, 1, 1, 2], [0], [0]>} : vector<2x8x8xbf16>, vector<2x8x8xbf16>, vector<2x8x8xf32> -> vector<2x8x8xf32>
    "tpu.trace_stop"() : () -> ()
    %48 = vector.extract_strided_slice %26 {offsets = [0, 0, 8], sizes = [2, 8, 8], strides = [1, 1, 1]} : vector<2x8x32xf32> to vector<2x8x8xf32>
    %49 = arith.truncf %48 : vector<2x8x8xf32> to vector<2x8x8xbf16>
    %50 = vector.extract_strided_slice %27 {offsets = [0, 0, 8], sizes = [2, 8, 8], strides = [1, 1, 1]} : vector<2x8x32xf32> to vector<2x8x8xf32>
    %51 = arith.truncf %50 : vector<2x8x8xf32> to vector<2x8x8xbf16>
    %52 = vector.extract_strided_slice %28 {offsets = [0, 0, 8], sizes = [2, 8, 8], strides = [1, 1, 1]} : vector<2x8x32xf32> to vector<2x8x8xf32>
    %53 = arith.truncf %52 : vector<2x8x8xf32> to vector<2x8x8xbf16>
    "tpu.trace_start"() <{level = 10 : i32, message = "bqd,bkd->bqk"}> : () -> ()
    %cst_24 = arith.constant dense<0.000000e+00> : vector<2x8x8xf32>
    %54 = tpu.matmul %49, %51, %cst_24 {dimension_numbers = #tpu.dot_dimension_numbers<[2], [2], [1], [1], [0, 0, 0, 1, 1, 1], [0], [0]>} : vector<2x8x8xbf16>, vector<2x8x8xbf16>, vector<2x8x8xf32> -> vector<2x8x8xf32>
    "tpu.trace_stop"() : () -> ()
    %cst_25 = arith.constant dense<0xFF800000> : vector<2x8xf32>
    %55 = vector.multi_reduction <maximumf>, %54, %cst_25 [2] : vector<2x8x8xf32> to vector<2x8xf32>
    %56 = vector.shape_cast %55 : vector<2x8xf32> to vector<2x8x1xf32>
    %57 = vector.broadcast %56 : vector<2x8x1xf32> to vector<2x8x8xf32>
    %58 = arith.subf %54, %57 : vector<2x8x8xf32>
    %59 = math.exp %58 : vector<2x8x8xf32>
    %cst_26 = arith.constant dense<0.000000e+00> : vector<2x8xf32>
    %60 = vector.multi_reduction <add>, %59, %cst_26 [2] : vector<2x8x8xf32> to vector<2x8xf32>
    %61 = vector.shape_cast %60 : vector<2x8xf32> to vector<2x8x1xf32>
    %62 = tpu.reciprocal %61 {approx = true} : vector<2x8x1xf32> -> vector<2x8x1xf32>
    %63 = vector.broadcast %62 : vector<2x8x1xf32> to vector<2x8x8xf32>
    %64 = arith.mulf %59, %63 : vector<2x8x8xf32>
    %65 = arith.truncf %64 : vector<2x8x8xf32> to vector<2x8x8xbf16>
    "tpu.trace_start"() <{level = 10 : i32, message = "bqk,bkd->bqd"}> : () -> ()
    %cst_27 = arith.constant dense<0.000000e+00> : vector<2x8x8xf32>
    %66 = tpu.matmul %65, %53, %cst_27 {dimension_numbers = #tpu.dot_dimension_numbers<[2], [1], [1], [2], [0, 0, 0, 1, 1, 2], [0], [0]>} : vector<2x8x8xbf16>, vector<2x8x8xbf16>, vector<2x8x8xf32> -> vector<2x8x8xf32>
    "tpu.trace_stop"() : () -> ()
    %67 = vector.extract_strided_slice %26 {offsets = [0, 0, 16], sizes = [2, 8, 8], strides = [1, 1, 1]} : vector<2x8x32xf32> to vector<2x8x8xf32>
    %68 = arith.truncf %67 : vector<2x8x8xf32> to vector<2x8x8xbf16>
    %69 = vector.extract_strided_slice %27 {offsets = [0, 0, 16], sizes = [2, 8, 8], strides = [1, 1, 1]} : vector<2x8x32xf32> to vector<2x8x8xf32>
    %70 = arith.truncf %69 : vector<2x8x8xf32> to vector<2x8x8xbf16>
    %71 = vector.extract_strided_slice %28 {offsets = [0, 0, 16], sizes = [2, 8, 8], strides = [1, 1, 1]} : vector<2x8x32xf32> to vector<2x8x8xf32>
    %72 = arith.truncf %71 : vector<2x8x8xf32> to vector<2x8x8xbf16>
    "tpu.trace_start"() <{level = 10 : i32, message = "bqd,bkd->bqk"}> : () -> ()
    %cst_28 = arith.constant dense<0.000000e+00> : vector<2x8x8xf32>
    %73 = tpu.matmul %68, %70, %cst_28 {dimension_numbers = #tpu.dot_dimension_numbers<[2], [2], [1], [1], [0, 0, 0, 1, 1, 1], [0], [0]>} : vector<2x8x8xbf16>, vector<2x8x8xbf16>, vector<2x8x8xf32> -> vector<2x8x8xf32>
    "tpu.trace_stop"() : () -> ()
    %cst_29 = arith.constant dense<0xFF800000> : vector<2x8xf32>
    %74 = vector.multi_reduction <maximumf>, %73, %cst_29 [2] : vector<2x8x8xf32> to vector<2x8xf32>
    %75 = vector.shape_cast %74 : vector<2x8xf32> to vector<2x8x1xf32>
    %76 = vector.broadcast %75 : vector<2x8x1xf32> to vector<2x8x8xf32>
    %77 = arith.subf %73, %76 : vector<2x8x8xf32>
    %78 = math.exp %77 : vector<2x8x8xf32>
    %cst_30 = arith.constant dense<0.000000e+00> : vector<2x8xf32>
    %79 = vector.multi_reduction <add>, %78, %cst_30 [2] : vector<2x8x8xf32> to vector<2x8xf32>
    %80 = vector.shape_cast %79 : vector<2x8xf32> to vector<2x8x1xf32>
    %81 = tpu.reciprocal %80 {approx = true} : vector<2x8x1xf32> -> vector<2x8x1xf32>
    %82 = vector.broadcast %81 : vector<2x8x1xf32> to vector<2x8x8xf32>
    %83 = arith.mulf %78, %82 : vector<2x8x8xf32>
    %84 = arith.truncf %83 : vector<2x8x8xf32> to vector<2x8x8xbf16>
    "tpu.trace_start"() <{level = 10 : i32, message = "bqk,bkd->bqd"}> : () -> ()
    %cst_31 = arith.constant dense<0.000000e+00> : vector<2x8x8xf32>
    %85 = tpu.matmul %84, %72, %cst_31 {dimension_numbers = #tpu.dot_dimension_numbers<[2], [1], [1], [2], [0, 0, 0, 1, 1, 2], [0], [0]>} : vector<2x8x8xbf16>, vector<2x8x8xbf16>, vector<2x8x8xf32> -> vector<2x8x8xf32>
    "tpu.trace_stop"() : () -> ()
    %86 = vector.extract_strided_slice %26 {offsets = [0, 0, 24], sizes = [2, 8, 8], strides = [1, 1, 1]} : vector<2x8x32xf32> to vector<2x8x8xf32>
    %87 = arith.truncf %86 : vector<2x8x8xf32> to vector<2x8x8xbf16>
    %88 = vector.extract_strided_slice %27 {offsets = [0, 0, 24], sizes = [2, 8, 8], strides = [1, 1, 1]} : vector<2x8x32xf32> to vector<2x8x8xf32>
    %89 = arith.truncf %88 : vector<2x8x8xf32> to vector<2x8x8xbf16>
    %90 = vector.extract_strided_slice %28 {offsets = [0, 0, 24], sizes = [2, 8, 8], strides = [1, 1, 1]} : vector<2x8x32xf32> to vector<2x8x8xf32>
    %91 = arith.truncf %90 : vector<2x8x8xf32> to vector<2x8x8xbf16>
    "tpu.trace_start"() <{level = 10 : i32, message = "bqd,bkd->bqk"}> : () -> ()
    %cst_32 = arith.constant dense<0.000000e+00> : vector<2x8x8xf32>
    %92 = tpu.matmul %87, %89, %cst_32 {dimension_numbers = #tpu.dot_dimension_numbers<[2], [2], [1], [1], [0, 0, 0, 1, 1, 1], [0], [0]>} : vector<2x8x8xbf16>, vector<2x8x8xbf16>, vector<2x8x8xf32> -> vector<2x8x8xf32>
    "tpu.trace_stop"() : () -> ()
    %cst_33 = arith.constant dense<0xFF800000> : vector<2x8xf32>
    %93 = vector.multi_reduction <maximumf>, %92, %cst_33 [2] : vector<2x8x8xf32> to vector<2x8xf32>
    %94 = vector.shape_cast %93 : vector<2x8xf32> to vector<2x8x1xf32>
    %95 = vector.broadcast %94 : vector<2x8x1xf32> to vector<2x8x8xf32>
    %96 = arith.subf %92, %95 : vector<2x8x8xf32>
    %97 = math.exp %96 : vector<2x8x8xf32>
    %cst_34 = arith.constant dense<0.000000e+00> : vector<2x8xf32>
    %98 = vector.multi_reduction <add>, %97, %cst_34 [2] : vector<2x8x8xf32> to vector<2x8xf32>
    %99 = vector.shape_cast %98 : vector<2x8xf32> to vector<2x8x1xf32>
    %100 = tpu.reciprocal %99 {approx = true} : vector<2x8x1xf32> -> vector<2x8x1xf32>
    %101 = vector.broadcast %100 : vector<2x8x1xf32> to vector<2x8x8xf32>
    %102 = arith.mulf %97, %101 : vector<2x8x8xf32>
    %103 = arith.truncf %102 : vector<2x8x8xf32> to vector<2x8x8xbf16>
    "tpu.trace_start"() <{level = 10 : i32, message = "bqk,bkd->bqd"}> : () -> ()
    %cst_35 = arith.constant dense<0.000000e+00> : vector<2x8x8xf32>
    %104 = tpu.matmul %103, %91, %cst_35 {dimension_numbers = #tpu.dot_dimension_numbers<[2], [1], [1], [2], [0, 0, 0, 1, 1, 2], [0], [0]>} : vector<2x8x8xbf16>, vector<2x8x8xbf16>, vector<2x8x8xf32> -> vector<2x8x8xf32>
    "tpu.trace_stop"() : () -> ()
    %105 = tpu.concatenate %47, %66, %85, %104 in 2 : vector<2x8x8xf32>, vector<2x8x8xf32>, vector<2x8x8xf32>, vector<2x8x8xf32> -> vector<2x8x32xf32>
    %106 = vector.shape_cast %105 : vector<2x8x32xf32> to vector<16x32xf32>
    %107 = arith.truncf %106 : vector<16x32xf32> to vector<16x32xbf16>
    %c0_36 = arith.constant 0 : index
    %c0_37 = arith.constant 0 : index
    %c0_38 = arith.constant 0 : index
    %108 = vector.load %arg6[%c0_36, %c0_37, %c0_38] : memref<1x32x32xbf16, #tpu.memory_space<vmem>>, vector<1x32x32xbf16>
    %109 = vector.shape_cast %108 : vector<1x32x32xbf16> to vector<32x32xbf16>
    %cst_39 = arith.constant dense<0.000000e+00> : vector<16x32xf32>
    %110 = tpu.matmul %107, %109, %cst_39 {dimension_numbers = #tpu.dot_dimension_numbers<[1], [0], [0], [1], [0, 0, 1, 1], [], []>} : vector<16x32xbf16>, vector<32x32xbf16>, vector<16x32xf32> -> vector<16x32xf32>
    %c0_40 = arith.constant 0 : index
    %c3 = arith.constant 3 : index
    %c0_41 = arith.constant 0 : index
    %111 = vector.load %arg9[%c0_40, %c3, %c0_41] : memref<1x9x32xf32, #tpu.memory_space<vmem>>, vector<1x1x32xf32>
    %112 = vector.shape_cast %111 : vector<1x1x32xf32> to vector<1x32xf32>
    %113 = vector.broadcast %112 : vector<1x32xf32> to vector<16x32xf32>
    %114 = arith.addf %110, %113 : vector<16x32xf32>
    %115 = arith.addf %3, %114 : vector<16x32xf32>
    %c0_42 = arith.constant 0 : index
    %c5 = arith.constant 5 : index
    %c0_43 = arith.constant 0 : index
    %116 = vector.load %arg9[%c0_42, %c5, %c0_43] : memref<1x9x32xf32, #tpu.memory_space<vmem>>, vector<1x1x32xf32>
    %117 = vector.shape_cast %116 : vector<1x1x32xf32> to vector<1x32xf32>
    %c0_44 = arith.constant 0 : index
    %c6 = arith.constant 6 : index
    %c0_45 = arith.constant 0 : index
    %118 = vector.load %arg9[%c0_44, %c6, %c0_45] : memref<1x9x32xf32, #tpu.memory_space<vmem>>, vector<1x1x32xf32>
    %119 = vector.shape_cast %118 : vector<1x1x32xf32> to vector<1x32xf32>
    %cst_46 = arith.constant dense<0.000000e+00> : vector<16xf32>
    %120 = vector.multi_reduction <add>, %115, %cst_46 [1] : vector<16x32xf32> to vector<16xf32>
    %121 = vector.shape_cast %120 : vector<16xf32> to vector<16x1xf32>
    %cst_47 = arith.constant 3.200000e+01 : f32
    %122 = vector.broadcast %cst_47 : f32 to vector<16x1xf32>
    %123 = arith.divf %121, %122 : vector<16x1xf32>
    %124 = vector.broadcast %123 : vector<16x1xf32> to vector<16x32xf32>
    %125 = arith.subf %115, %124 : vector<16x32xf32>
    %126 = arith.mulf %125, %125 : vector<16x32xf32>
    %cst_48 = arith.constant dense<0.000000e+00> : vector<16xf32>
    %127 = vector.multi_reduction <add>, %126, %cst_48 [1] : vector<16x32xf32> to vector<16xf32>
    %128 = vector.shape_cast %127 : vector<16xf32> to vector<16x1xf32>
    %cst_49 = arith.constant 3.200000e+01 : f32
    %129 = vector.broadcast %cst_49 : f32 to vector<16x1xf32>
    %130 = arith.divf %128, %129 : vector<16x1xf32>
    %131 = vector.broadcast %123 : vector<16x1xf32> to vector<16x32xf32>
    %132 = arith.subf %115, %131 : vector<16x32xf32>
    %cst_50 = arith.constant 9.99999974E-6 : f32
    %133 = vector.broadcast %cst_50 : f32 to vector<16x1xf32>
    %134 = arith.addf %130, %133 : vector<16x1xf32>
    %135 = math.rsqrt %134 : vector<16x1xf32>
    %136 = vector.broadcast %135 : vector<16x1xf32> to vector<16x32xf32>
    %137 = arith.mulf %132, %136 : vector<16x32xf32>
    %138 = vector.broadcast %117 : vector<1x32xf32> to vector<16x32xf32>
    %139 = arith.mulf %137, %138 : vector<16x32xf32>
    %140 = vector.broadcast %119 : vector<1x32xf32> to vector<16x32xf32>
    %141 = arith.addf %139, %140 : vector<16x32xf32>
    %142 = arith.truncf %141 : vector<16x32xf32> to vector<16x32xbf16>
    %c0_51 = arith.constant 0 : index
    %c0_52 = arith.constant 0 : index
    %c0_53 = arith.constant 0 : index
    %143 = vector.load %arg7[%c0_51, %c0_52, %c0_53] : memref<1x32x64xbf16, #tpu.memory_space<vmem>>, vector<1x32x64xbf16>
    %144 = vector.shape_cast %143 : vector<1x32x64xbf16> to vector<32x64xbf16>
    %cst_54 = arith.constant dense<0.000000e+00> : vector<16x64xf32>
    %145 = tpu.matmul %142, %144, %cst_54 {dimension_numbers = #tpu.dot_dimension_numbers<[1], [0], [0], [1], [0, 0, 1, 1], [], []>} : vector<16x32xbf16>, vector<32x64xbf16>, vector<16x64xf32> -> vector<16x64xf32>
    %c0_55 = arith.constant 0 : index
    %c0_56 = arith.constant 0 : index
    %c0_57 = arith.constant 0 : index
    %146 = vector.load %arg10[%c0_55, %c0_56, %c0_57] : memref<1x1x64xf32, #tpu.memory_space<vmem>>, vector<1x1x64xf32>
    %147 = vector.shape_cast %146 : vector<1x1x64xf32> to vector<1x64xf32>
    %148 = vector.broadcast %147 : vector<1x64xf32> to vector<16x64xf32>
    %149 = arith.addf %145, %148 : vector<16x64xf32>
    %cst_58 = arith.constant 0.000000e+00 : f32
    %150 = vector.broadcast %cst_58 : f32 to vector<16x64xf32>
    %151 = arith.maximumf %149, %150 : vector<16x64xf32>
    %152 = arith.truncf %151 : vector<16x64xf32> to vector<16x64xbf16>
    %c0_59 = arith.constant 0 : index
    %c0_60 = arith.constant 0 : index
    %c0_61 = arith.constant 0 : index
    %153 = vector.load %arg8[%c0_59, %c0_60, %c0_61] : memref<1x64x32xbf16, #tpu.memory_space<vmem>>, vector<1x64x32xbf16>
    %154 = vector.shape_cast %153 : vector<1x64x32xbf16> to vector<64x32xbf16>
    %cst_62 = arith.constant dense<0.000000e+00> : vector<16x32xf32>
    %155 = tpu.matmul %152, %154, %cst_62 {dimension_numbers = #tpu.dot_dimension_numbers<[1], [0], [0], [1], [0, 0, 1, 1], [], []>} : vector<16x64xbf16>, vector<64x32xbf16>, vector<16x32xf32> -> vector<16x32xf32>
    %c0_63 = arith.constant 0 : index
    %c4 = arith.constant 4 : index
    %c0_64 = arith.constant 0 : index
    %156 = vector.load %arg9[%c0_63, %c4, %c0_64] : memref<1x9x32xf32, #tpu.memory_space<vmem>>, vector<1x1x32xf32>
    %157 = vector.shape_cast %156 : vector<1x1x32xf32> to vector<1x32xf32>
    %158 = vector.broadcast %157 : vector<1x32xf32> to vector<16x32xf32>
    %159 = arith.addf %155, %158 : vector<16x32xf32>
    %160 = arith.addf %141, %159 : vector<16x32xf32>
    %c0_65 = arith.constant 0 : index
    %c7 = arith.constant 7 : index
    %c0_66 = arith.constant 0 : index
    %161 = vector.load %arg9[%c0_65, %c7, %c0_66] : memref<1x9x32xf32, #tpu.memory_space<vmem>>, vector<1x1x32xf32>
    %162 = vector.shape_cast %161 : vector<1x1x32xf32> to vector<1x32xf32>
    %c0_67 = arith.constant 0 : index
    %c8 = arith.constant 8 : index
    %c0_68 = arith.constant 0 : index
    %163 = vector.load %arg9[%c0_67, %c8, %c0_68] : memref<1x9x32xf32, #tpu.memory_space<vmem>>, vector<1x1x32xf32>
    %164 = vector.shape_cast %163 : vector<1x1x32xf32> to vector<1x32xf32>
    %cst_69 = arith.constant dense<0.000000e+00> : vector<16xf32>
    %165 = vector.multi_reduction <add>, %160, %cst_69 [1] : vector<16x32xf32> to vector<16xf32>
    %166 = vector.shape_cast %165 : vector<16xf32> to vector<16x1xf32>
    %cst_70 = arith.constant 3.200000e+01 : f32
    %167 = vector.broadcast %cst_70 : f32 to vector<16x1xf32>
    %168 = arith.divf %166, %167 : vector<16x1xf32>
    %169 = vector.broadcast %168 : vector<16x1xf32> to vector<16x32xf32>
    %170 = arith.subf %160, %169 : vector<16x32xf32>
    %171 = arith.mulf %170, %170 : vector<16x32xf32>
    %cst_71 = arith.constant dense<0.000000e+00> : vector<16xf32>
    %172 = vector.multi_reduction <add>, %171, %cst_71 [1] : vector<16x32xf32> to vector<16xf32>
    %173 = vector.shape_cast %172 : vector<16xf32> to vector<16x1xf32>
    %cst_72 = arith.constant 3.200000e+01 : f32
    %174 = vector.broadcast %cst_72 : f32 to vector<16x1xf32>
    %175 = arith.divf %173, %174 : vector<16x1xf32>
    %176 = vector.broadcast %168 : vector<16x1xf32> to vector<16x32xf32>
    %177 = arith.subf %160, %176 : vector<16x32xf32>
    %cst_73 = arith.constant 9.99999974E-6 : f32
    %178 = vector.broadcast %cst_73 : f32 to vector<16x1xf32>
    %179 = arith.addf %175, %178 : vector<16x1xf32>
    %180 = math.rsqrt %179 : vector<16x1xf32>
    %181 = vector.broadcast %180 : vector<16x1xf32> to vector<16x32xf32>
    %182 = arith.mulf %177, %181 : vector<16x32xf32>
    %183 = vector.broadcast %162 : vector<1x32xf32> to vector<16x32xf32>
    %184 = arith.mulf %182, %183 : vector<16x32xf32>
    %185 = vector.broadcast %164 : vector<1x32xf32> to vector<16x32xf32>
    %186 = arith.addf %184, %185 : vector<16x32xf32>
    %c0_74 = arith.constant 0 : index
    %c0_75 = arith.constant 0 : index
    %187 = vector.load %arg13[%c0_74, %c0_75] : memref<16x32xf32, #tpu.memory_space<vmem>>, vector<16x32xf32>
    tpu.vector_store %arg13[%c0_74, %c0_75], %186 {strides = array<i32>} : memref<16x32xf32, #tpu.memory_space<vmem>>, vector<16x32xf32>,
    %c1_i32 = arith.constant 1 : i32
    %188 = arith.cmpi eq, %arg1, %c1_i32 : i32
    %189 = arith.extui %188 : i1 to i32
    %c0_i32_76 = arith.constant 0 : i32
    %190 = arith.cmpi ne, %189, %c0_i32_76 : i32
    scf.if %190 {
      %c0_77 = arith.constant 0 : index
      %c0_78 = arith.constant 0 : index
      %191 = vector.load %arg11[%c0_77, %c0_78] : memref<2x32xf32, #tpu.memory_space<vmem>>, vector<1x32xf32>
      %c1_79 = arith.constant 1 : index
      %c0_80 = arith.constant 0 : index
      %192 = vector.load %arg11[%c1_79, %c0_80] : memref<2x32xf32, #tpu.memory_space<vmem>>, vector<1x32xf32>
      %cst_81 = arith.constant dense<0.000000e+00> : vector<16xf32>
      %193 = vector.multi_reduction <add>, %186, %cst_81 [1] : vector<16x32xf32> to vector<16xf32>
      %194 = vector.shape_cast %193 : vector<16xf32> to vector<16x1xf32>
      %cst_82 = arith.constant 3.200000e+01 : f32
      %195 = vector.broadcast %cst_82 : f32 to vector<16x1xf32>
      %196 = arith.divf %194, %195 : vector<16x1xf32>
      %197 = vector.broadcast %196 : vector<16x1xf32> to vector<16x32xf32>
      %198 = arith.subf %186, %197 : vector<16x32xf32>
      %199 = arith.mulf %198, %198 : vector<16x32xf32>
      %cst_83 = arith.constant dense<0.000000e+00> : vector<16xf32>
      %200 = vector.multi_reduction <add>, %199, %cst_83 [1] : vector<16x32xf32> to vector<16xf32>
      %201 = vector.shape_cast %200 : vector<16xf32> to vector<16x1xf32>
      %cst_84 = arith.constant 3.200000e+01 : f32
      %202 = vector.broadcast %cst_84 : f32 to vector<16x1xf32>
      %203 = arith.divf %201, %202 : vector<16x1xf32>
      %204 = vector.broadcast %196 : vector<16x1xf32> to vector<16x32xf32>
      %205 = arith.subf %186, %204 : vector<16x32xf32>
      %cst_85 = arith.constant 9.99999974E-6 : f32
      %206 = vector.broadcast %cst_85 : f32 to vector<16x1xf32>
      %207 = arith.addf %203, %206 : vector<16x1xf32>
      %208 = math.rsqrt %207 : vector<16x1xf32>
      %209 = vector.broadcast %208 : vector<16x1xf32> to vector<16x32xf32>
      %210 = arith.mulf %205, %209 : vector<16x32xf32>
      %211 = vector.broadcast %191 : vector<1x32xf32> to vector<16x32xf32>
      %212 = arith.mulf %210, %211 : vector<16x32xf32>
      %213 = vector.broadcast %192 : vector<1x32xf32> to vector<16x32xf32>
      %214 = arith.addf %212, %213 : vector<16x32xf32>
      %215 = vector.shape_cast %214 : vector<16x32xf32> to vector<2x8x32xf32>
      %c0_86 = arith.constant 0 : index
      %c0_87 = arith.constant 0 : index
      %c0_88 = arith.constant 0 : index
      %216 = vector.load %arg12[%c0_86, %c0_87, %c0_88] : memref<2x8x32xf32, #tpu.memory_space<vmem>>, vector<2x8x32xf32>
      tpu.vector_store %arg12[%c0_86, %c0_87, %c0_88], %215 {strides = array<i32>} : memref<2x8x32xf32, #tpu.memory_space<vmem>>, vector<2x8x32xf32>,
    } else {
    }
    return
  }
  func.func @transform_0(%arg0: i32, %arg1: i32) -> (i32, i32, i32) {
    %c0_i32 = arith.constant 0 : i32
    %c0_i32_0 = arith.constant 0 : i32
    %c0_i32_1 = arith.constant 0 : i32
    return %arg0, %c0_i32, %c0_i32_0 : i32, i32, i32
  }
  func.func @transform_1(%arg0: i32, %arg1: i32) -> (i32, i32, i32) {
    %c0_i32 = arith.constant 0 : i32
    %c0_i32_0 = arith.constant 0 : i32
    %c0_i32_1 = arith.constant 0 : i32
    return %arg1, %c0_i32, %c0_i32_0 : i32, i32, i32
  }
  func.func @transform_2(%arg0: i32, %arg1: i32) -> (i32, i32, i32) {
    %c0_i32 = arith.constant 0 : i32
    %c0_i32_0 = arith.constant 0 : i32
    %c0_i32_1 = arith.constant 0 : i32
    return %arg1, %c0_i32, %c0_i32_0 : i32, i32, i32
  }
  func.func @transform_3(%arg0: i32, %arg1: i32) -> (i32, i32, i32) {
    %c0_i32 = arith.constant 0 : i32
    %c0_i32_0 = arith.constant 0 : i32
    %c0_i32_1 = arith.constant 0 : i32
    return %arg1, %c0_i32, %c0_i32_0 : i32, i32, i32
  }
  func.func @transform_4(%arg0: i32, %arg1: i32) -> (i32, i32, i32) {
    %c0_i32 = arith.constant 0 : i32
    %c0_i32_0 = arith.constant 0 : i32
    %c0_i32_1 = arith.constant 0 : i32
    return %arg1, %c0_i32, %c0_i32_0 : i32, i32, i32
  }
  func.func @transform_5(%arg0: i32, %arg1: i32) -> (i32, i32, i32) {
    %c0_i32 = arith.constant 0 : i32
    %c0_i32_0 = arith.constant 0 : i32
    %c0_i32_1 = arith.constant 0 : i32
    return %arg1, %c0_i32, %c0_i32_0 : i32, i32, i32
  }
  func.func @transform_6(%arg0: i32, %arg1: i32) -> (i32, i32, i32) {
    %c0_i32 = arith.constant 0 : i32
    %c0_i32_0 = arith.constant 0 : i32
    %c0_i32_1 = arith.constant 0 : i32
    return %arg1, %c0_i32, %c0_i32_0 : i32, i32, i32
  }
  func.func @transform_7(%arg0: i32, %arg1: i32) -> (i32, i32, i32) {
    %c0_i32 = arith.constant 0 : i32
    %c0_i32_0 = arith.constant 0 : i32
    %c0_i32_1 = arith.constant 0 : i32
    return %arg1, %c0_i32, %c0_i32_0 : i32, i32, i32
  }
  func.func @transform_8(%arg0: i32, %arg1: i32) -> (i32, i32, i32) {
    %c0_i32 = arith.constant 0 : i32
    %c0_i32_0 = arith.constant 0 : i32
    %c0_i32_1 = arith.constant 0 : i32
    return %arg1, %c0_i32, %c0_i32_0 : i32, i32, i32
  }
  func.func @transform_9(%arg0: i32, %arg1: i32) -> (i32, i32) {
    %c0_i32 = arith.constant 0 : i32
    %c0_i32_0 = arith.constant 0 : i32
    %c0_i32_1 = arith.constant 0 : i32
    return %c0_i32, %c0_i32_0 : i32, i32
  }
  func.func @transform_10(%arg0: i32, %arg1: i32) -> (i32, i32, i32) {
    %c0_i32 = arith.constant 0 : i32
    %c0_i32_0 = arith.constant 0 : i32
    %c0_i32_1 = arith.constant 0 : i32
    return %arg0, %c0_i32, %c0_i32_0 : i32, i32, i32
  }
}

</mosaic_0001>

<llo_original>
// kernel: transformer_forward.1
$region0: #{transformer_forward.1}
  #allocation0 [shape = 'u32[]', space=smem, size = 0x4, offset = 0x4, fixed_abs, tag = 'smem constant byte address 0x4 - core index']
  #allocation1 [shape = 'u32[72,128]{1,0:T(1,128)}', space=vmem, size = 0x9000, scoped, tag = 'internal scratch']
  #allocation2 [shape = 'f32[16,32]{1,0:T(8,128)}', space=vmem, size = 0x2000, scoped, tag = 'scratch operand']
  %s0 = inlined_call_operand.vmem [shape: f32[2,8,32], index: 0, kind: input, shape index: {}]
  %s1 = inlined_call_operand.vmem [shape: bf16[2,32,32], index: 1, kind: input, shape index: {}]
  %s2 = inlined_call_operand.vmem [shape: bf16[2,32,32], index: 2, kind: input, shape index: {}]
  %s3 = inlined_call_operand.vmem [shape: bf16[2,32,32], index: 3, kind: input, shape index: {}]
  %s4 = inlined_call_operand.vmem [shape: bf16[2,32,32], index: 4, kind: input, shape index: {}]
  %s5 = inlined_call_operand.vmem [shape: bf16[2,32,64], index: 5, kind: input, shape index: {}]
  %s6 = inlined_call_operand.vmem [shape: bf16[2,64,32], index: 6, kind: input, shape index: {}]
  %s7 = inlined_call_operand.vmem [shape: f32[2,9,32], index: 7, kind: input, shape index: {}]
  %s8 = inlined_call_operand.vmem [shape: f32[2,1,64], index: 8, kind: input, shape index: {}]
  %s9 = inlined_call_operand.vmem [shape: f32[2,32], index: 9, kind: input, shape index: {}]
  %s10 = inlined_call_operand.vmem [shape: f32[2,8,32], index: 10, kind: output, shape index: {}]
  %s11 = sld [smem:[#allocation0]]
  $region81: #{transformer_forward.1} parent=0
    _
  %s13 = ssub.s32 1, %s11
  %s14 = scalar_select 0, %s13, %s11
  loop: start=0, step=1, limit=4
  $region2: #{transformer_forward.1} parent=0 // loop_pre_header
    _
  $region3: #{transformer_forward.1} parent=0 // loop_header
    %s16 = sphi 0, %s20
    %p17 = scmp.ge.s32.totalorder %s16, 4
    %s23 = sphi 0, %s35
    %s24 = sphi 0, %s31
    %s25 = sphi 0, %s23
    %s26 = sphi 0, %s24
    %s27 = sphi 0, %s25
    %s28 = sphi 0, %s26
    %s38 = sphi 0, %s40
    %s41 = sphi 0, %s38
    %s42 = sphi 0, %s41
    %s58 = sphi 0, %s42
    %s64 = sphi 0, %s66
    %s67 = sphi 0, %s64
    %s68 = sphi 0, %s67
    %s84 = sphi 0, %s68
    %s90 = sphi 0, %s92
    %s93 = sphi 0, %s90
    %s94 = sphi 0, %s93
    %s110 = sphi 0, %s94
    %s116 = sphi 0, %s118
    %s119 = sphi 0, %s116
    %s120 = sphi 0, %s119
    %s136 = sphi 0, %s120
    %s142 = sphi 0, %s144
    %s145 = sphi 0, %s142
    %s146 = sphi 0, %s145
    %s162 = sphi 0, %s146
    %s168 = sphi 0, %s170
    %s171 = sphi 0, %s168
    %s172 = sphi 0, %s171
    %s188 = sphi 0, %s172
    %s194 = sphi 0, %s196
    %s197 = sphi 0, %s194
    %s198 = sphi 0, %s197
    %s214 = sphi 0, %s198
    %s220 = sphi 0, %s222
    %s223 = sphi 0, %s220
    %s224 = sphi 0, %s223
    %s240 = sphi 0, %s224
    %s246 = sphi 0, %s248
    %s249 = sphi 0, %s246
    %s250 = sphi 0, %s249
    %s266 = sphi 0, %s250
    %s270 = sphi 0, %s270
    %s272 = sphi 0, %s270
    %s273 = sphi 0, %s272
    %s287 = sphi 0, %s273
    %s293 = sphi 0, %s295
    %s296 = sphi 0, %s293
    %s297 = sphi 0, %s296
    %s313 = sphi 0, %s297
  $region4: #{transformer_forward.1} parent=0 // loop_header_branch
    %19 = sbr.rel (%p17) target = $region8
  $region5: #{transformer_forward.1} parent=0 // loop_body
    %s21 = ssub.s32 %s16, 1
    %s22 = ssub.s32 %s16, 2
    %s29 = sadd.s32 1, %s24
    %p30 = scmp.ge.s32.totalorder %s29, 2
    %s31 = scalar_select %p30, 0, %s29
    %s32 = sadd.s32 1, %s23
    %s33 = scalar_select %p30, %s32, %s23
    %p34 = scmp.ge.s32.totalorder %s33, 1
    %s35 = scalar_select %p34, 0, %s33
    %s36 = ssub.s32 %s23, %s35
    %p37 = scmp.eq.s32.totalorder %s36, 0
    %s39 = sadd.s32 %s38, 1
    %s40 = scalar_select %p37, %s38, %s39
    %p43 = pneg %p37
    %p44 = scmp.eq.s32.totalorder %s16, 1
    %p45 = por %p43, %p44
    %p46 = scmp.ne.s32.totalorder %s38, %s41
    %p47 = scmp.eq.s32.totalorder %s16, 0
    %p48 = por %p46, %p47
    %p49 = scmp.ne.s32.totalorder %s38, %s41
    %p50 = scmp.eq.s32.totalorder %s21, 1
    %p51 = por %p49, %p50
    %p52 = scmp.ne.s32.totalorder %s41, %s42
    %p53 = scmp.eq.s32.totalorder %s21, 0
    %p54 = por %p52, %p53
    %p55 = scmp.ne.s32.totalorder %s41, %s42
    %p56 = scmp.eq.s32.totalorder %s22, 1
    %p57 = por %p55, %p56
    %p59 = scmp.ne.s32.totalorder %s42, %s58
    %p60 = scmp.eq.s32.totalorder %s22, 0
    %p61 = por %p59, %p60
    %s62 = ssub.s32 %s24, %s31
    %p63 = scmp.eq.s32.totalorder %s62, 0
    %s65 = sadd.s32 %s64, 1
    %s66 = scalar_select %p63, %s64, %s65
    %p69 = pneg %p63
    %p70 = scmp.eq.s32.totalorder %s16, 1
    %p71 = por %p69, %p70
    %p72 = scmp.ne.s32.totalorder %s64, %s67
    %p73 = scmp.eq.s32.totalorder %s16, 0
    %p74 = por %p72, %p73
    %p75 = scmp.ne.s32.totalorder %s64, %s67
    %p76 = scmp.eq.s32.totalorder %s21, 1
    %p77 = por %p75, %p76
    %p78 = scmp.ne.s32.totalorder %s67, %s68
    %p79 = scmp.eq.s32.totalorder %s21, 0
    %p80 = por %p78, %p79
    %p81 = scmp.ne.s32.totalorder %s67, %s68
    %p82 = scmp.eq.s32.totalorder %s22, 1
    %p83 = por %p81, %p82
    %p85 = scmp.ne.s32.totalorder %s68, %s84
    %p86 = scmp.eq.s32.totalorder %s22, 0
    %p87 = por %p85, %p86
    %s88 = ssub.s32 %s24, %s31
    %p89 = scmp.eq.s32.totalorder %s88, 0
    %s91 = sadd.s32 %s90, 1
    %s92 = scalar_select %p89, %s90, %s91
    %p95 = pneg %p89
    %p96 = scmp.eq.s32.totalorder %s16, 1
    %p97 = por %p95, %p96
    %p98 = scmp.ne.s32.totalorder %s90, %s93
    %p99 = scmp.eq.s32.totalorder %s16, 0
    %p100 = por %p98, %p99
    %p101 = scmp.ne.s32.totalorder %s90, %s93
    %p102 = scmp.eq.s32.totalorder %s21, 1
    %p103 = por %p101, %p102
    %p104 = scmp.ne.s32.totalorder %s93, %s94
    %p105 = scmp.eq.s32.totalorder %s21, 0
    %p106 = por %p104, %p105
    %p107 = scmp.ne.s32.totalorder %s93, %s94
    %p108 = scmp.eq.s32.totalorder %s22, 1
    %p109 = por %p107, %p108
    %p111 = scmp.ne.s32.totalorder %s94, %s110
    %p112 = scmp.eq.s32.totalorder %s22, 0
    %p113 = por %p111, %p112
    %s114 = ssub.s32 %s24, %s31
    %p115 = scmp.eq.s32.totalorder %s114, 0
    %s117 = sadd.s32 %s116, 1
    %s118 = scalar_select %p115, %s116, %s117
    %p121 = pneg %p115
    %p122 = scmp.eq.s32.totalorder %s16, 1
    %p123 = por %p121, %p122
    %p124 = scmp.ne.s32.totalorder %s116, %s119
    %p125 = scmp.eq.s32.totalorder %s16, 0
    %p126 = por %p124, %p125
    %p127 = scmp.ne.s32.totalorder %s116, %s119
    %p128 = scmp.eq.s32.totalorder %s21, 1
    %p129 = por %p127, %p128
    %p130 = scmp.ne.s32.totalorder %s119, %s120
    %p131 = scmp.eq.s32.totalorder %s21, 0
    %p132 = por %p130, %p131
    %p133 = scmp.ne.s32.totalorder %s119, %s120
    %p134 = scmp.eq.s32.totalorder %s22, 1
    %p135 = por %p133, %p134
    %p137 = scmp.ne.s32.totalorder %s120, %s136
    %p138 = scmp.eq.s32.totalorder %s22, 0
    %p139 = por %p137, %p138
    %s140 = ssub.s32 %s24, %s31
    %p141 = scmp.eq.s32.totalorder %s140, 0
    %s143 = sadd.s32 %s142, 1
    %s144 = scalar_select %p141, %s142, %s143
    %p147 = pneg %p141
    %p148 = scmp.eq.s32.totalorder %s16, 1
    %p149 = por %p147, %p148
    %p150 = scmp.ne.s32.totalorder %s142, %s145
    %p151 = scmp.eq.s32.totalorder %s16, 0
    %p152 = por %p150, %p151
    %p153 = scmp.ne.s32.totalorder %s142, %s145
    %p154 = scmp.eq.s32.totalorder %s21, 1
    %p155 = por %p153, %p154
    %p156 = scmp.ne.s32.totalorder %s145, %s146
    %p157 = scmp.eq.s32.totalorder %s21, 0
    %p158 = por %p156, %p157
    %p159 = scmp.ne.s32.totalorder %s145, %s146
    %p160 = scmp.eq.s32.totalorder %s22, 1
    %p161 = por %p159, %p160
    %p163 = scmp.ne.s32.totalorder %s146, %s162
    %p164 = scmp.eq.s32.totalorder %s22, 0
    %p165 = por %p163, %p164
    %s166 = ssub.s32 %s24, %s31
    %p167 = scmp.eq.s32.totalorder %s166, 0
    %s169 = sadd.s32 %s168, 1
    %s170 = scalar_select %p167, %s168, %s169
    %p173 = pneg %p167
    %p174 = scmp.eq.s32.totalorder %s16, 1
    %p175 = por %p173, %p174
    %p176 = scmp.ne.s32.totalorder %s168, %s171
    %p177 = scmp.eq.s32.totalorder %s16, 0
    %p178 = por %p176, %p177
    %p179 = scmp.ne.s32.totalorder %s168, %s171
    %p180 = scmp.eq.s32.totalorder %s21, 1
    %p181 = por %p179, %p180
    %p182 = scmp.ne.s32.totalorder %s171, %s172
    %p183 = scmp.eq.s32.totalorder %s21, 0
    %p184 = por %p182, %p183
    %p185 = scmp.ne.s32.totalorder %s171, %s172
    %p186 = scmp.eq.s32.totalorder %s22, 1
    %p187 = por %p185, %p186
    %p189 = scmp.ne.s32.totalorder %s172, %s188
    %p190 = scmp.eq.s32.totalorder %s22, 0
    %p191 = por %p189, %p190
    %s192 = ssub.s32 %s24, %s31
    %p193 = scmp.eq.s32.totalorder %s192, 0
    %s195 = sadd.s32 %s194, 1
    %s196 = scalar_select %p193, %s194, %s195
    %p199 = pneg %p193
    %p200 = scmp.eq.s32.totalorder %s16, 1
    %p201 = por %p199, %p200
    %p202 = scmp.ne.s32.totalorder %s194, %s197
    %p203 = scmp.eq.s32.totalorder %s16, 0
    %p204 = por %p202, %p203
    %p205 = scmp.ne.s32.totalorder %s194, %s197
    %p206 = scmp.eq.s32.totalorder %s21, 1
    %p207 = por %p205, %p206
    %p208 = scmp.ne.s32.totalorder %s197, %s198
    %p209 = scmp.eq.s32.totalorder %s21, 0
    %p210 = por %p208, %p209
    %p211 = scmp.ne.s32.totalorder %s197, %s198
    %p212 = scmp.eq.s32.totalorder %s22, 1
    %p213 = por %p211, %p212
    %p215 = scmp.ne.s32.totalorder %s198, %s214
    %p216 = scmp.eq.s32.totalorder %s22, 0
    %p217 = por %p215, %p216
    %s218 = ssub.s32 %s24, %s31
    %p219 = scmp.eq.s32.totalorder %s218, 0
    %s221 = sadd.s32 %s220, 1
    %s222 = scalar_select %p219, %s220, %s221
    %p225 = pneg %p219
    %p226 = scmp.eq.s32.totalorder %s16, 1
    %p227 = por %p225, %p226
    %p228 = scmp.ne.s32.totalorder %s220, %s223
    %p229 = scmp.eq.s32.totalorder %s16, 0
    %p230 = por %p228, %p229
    %p231 = scmp.ne.s32.totalorder %s220, %s223
    %p232 = scmp.eq.s32.totalorder %s21, 1
    %p233 = por %p231, %p232
    %p234 = scmp.ne.s32.totalorder %s223, %s224
    %p235 = scmp.eq.s32.totalorder %s21, 0
    %p236 = por %p234, %p235
    %p237 = scmp.ne.s32.totalorder %s223, %s224
    %p238 = scmp.eq.s32.totalorder %s22, 1
    %p239 = por %p237, %p238
    %p241 = scmp.ne.s32.totalorder %s224, %s240
    %p242 = scmp.eq.s32.totalorder %s22, 0
    %p243 = por %p241, %p242
    %s244 = ssub.s32 %s24, %s31
    %p245 = scmp.eq.s32.totalorder %s244, 0
    %s247 = sadd.s32 %s246, 1
    %s248 = scalar_select %p245, %s246, %s247
    %p251 = pneg %p245
    %p252 = scmp.eq.s32.totalorder %s16, 1
    %p253 = por %p251, %p252
    %p254 = scmp.ne.s32.totalorder %s246, %s249
    %p255 = scmp.eq.s32.totalorder %s16, 0
    %p256 = por %p254, %p255
    %p257 = scmp.ne.s32.totalorder %s246, %s249
    %p258 = scmp.eq.s32.totalorder %s21, 1
    %p259 = por %p257, %p258
    %p260 = scmp.ne.s32.totalorder %s249, %s250
    %p261 = scmp.eq.s32.totalorder %s21, 0
    %p262 = por %p260, %p261
    %p263 = scmp.ne.s32.totalorder %s249, %s250
    %p264 = scmp.eq.s32.totalorder %s22, 1
    %p265 = por %p263, %p264
    %p267 = scmp.ne.s32.totalorder %s250, %s266
    %p268 = scmp.eq.s32.totalorder %s22, 0
    %p269 = por %p267, %p268
    %s271 = sadd.s32 %s270, 1
    %p274 = scmp.eq.s32.totalorder %s16, 1
    %p275 = scmp.ne.s32.totalorder %s270, %s272
    %p276 = scmp.eq.s32.totalorder %s16, 0
    %p277 = por %p275, %p276
    %p278 = scmp.ne.s32.totalorder %s270, %s272
    %p279 = scmp.eq.s32.totalorder %s21, 1
    %p280 = por %p278, %p279
    %p281 = scmp.ne.s32.totalorder %s272, %s273
    %p282 = scmp.eq.s32.totalorder %s21, 0
    %p283 = por %p281, %p282
    %p284 = scmp.ne.s32.totalorder %s272, %s273
    %p285 = scmp.eq.s32.totalorder %s22, 1
    %p286 = por %p284, %p285
    %p288 = scmp.ne.s32.totalorder %s273, %s287
    %p289 = scmp.eq.s32.totalorder %s22, 0
    %p290 = por %p288, %p289
    %s291 = ssub.s32 %s23, %s35
    %p292 = scmp.eq.s32.totalorder %s291, 0
    %s294 = sadd.s32 %s293, 1
    %s295 = scalar_select %p292, %s293, %s294
    %p298 = pneg %p292
    %p299 = scmp.eq.s32.totalorder %s16, 1
    %p300 = por %p298, %p299
    %p301 = scmp.ne.s32.totalorder %s293, %s296
    %p302 = scmp.eq.s32.totalorder %s16, 0
    %p303 = por %p301, %p302
    %p304 = scmp.ne.s32.totalorder %s293, %s296
    %p305 = scmp.eq.s32.totalorder %s21, 1
    %p306 = por %p304, %p305
    %p307 = scmp.ne.s32.totalorder %s296, %s297
    %p308 = scmp.eq.s32.totalorder %s21, 0
    %p309 = por %p307, %p308
    %p310 = scmp.ne.s32.totalorder %s296, %s297
    %p311 = scmp.eq.s32.totalorder %s22, 1
    %p312 = por %p310, %p311
    %p314 = scmp.ne.s32.totalorder %s297, %s313
    %p315 = scmp.eq.s32.totalorder %s22, 0
    %p316 = por %p314, %p315
    %p317 = scmp.le.s32.totalorder 1, %s16
    %p318 = scmp.lt.s32.totalorder %s16, 3
    %p319 = pnand %p317, %p318
    %p320 = pneg %p319
    // Predicated region
    $region9: #{transformer_forward.1} parent=5 // pred_check
      _
    $region10: #{transformer_forward.1} parent=5 // pred_check_branch
      %322 = sbr.rel (%p319) target = $region12
    $region11: #{transformer_forward.1} parent=5 // pred_region
      %s323 = ssub.s32 %s16, 1
      // Predicated region
      $region13: #{transformer_forward.1} parent=11 // pred_check
        %p324 = pneg %p54
      $region14: #{transformer_forward.1} parent=11 // pred_check_branch
        %326 = sbr.rel (%p324) target = $region16
      $region15: #{transformer_forward.1} parent=11 // pred_region
        %s327 = smul.u32 2, %s25
        %p328 = scmp.lt.s32.totalorder %s327, 1
        %s329 = scalar_select %p328, %s327, 1
        %s330 = smul.addr %s329, 8
        %s331 = scalar_lea.vmem %s0, %s330
        %s332 = smul.u32 2, %s25
      $region16: #{transformer_forward.1} parent=11 // pred_fallthru
        _
      // Predicated region
      $region17: #{transformer_forward.1} parent=11 // pred_check
        %p333 = pneg %p283
      $region18: #{transformer_forward.1} parent=11 // pred_check_branch
        %335 = sbr.rel (%p333) target = $region20
      $region19: #{transformer_forward.1} parent=11 // pred_region
        _
      $region20: #{transformer_forward.1} parent=11 // pred_fallthru
        _
    $region12: #{transformer_forward.1} parent=5 // pred_fallthru
      _
    %p336 = scmp.lt.s32.totalorder %s16, 2
    // Predicated region
    $region21: #{transformer_forward.1} parent=5 // pred_check
      %p337 = pneg %p336
    $region22: #{transformer_forward.1} parent=5 // pred_check_branch
      %339 = sbr.rel (%p337) target = $region24
    $region23: #{transformer_forward.1} parent=5 // pred_region
      // Predicated region
      $region25: #{transformer_forward.1} parent=23 // pred_check
        %p340 = pneg %p74
      $region26: #{transformer_forward.1} parent=23 // pred_check_branch
        %342 = sbr.rel (%p340) target = $region28
      $region27: #{transformer_forward.1} parent=23 // pred_region
        %p343 = scmp.lt.s32.totalorder %s24, 1
        %s344 = scalar_select %p343, %s24, 1
        %s345 = smul.addr %s344, 4
        %s346 = smul.addr %s345, 4
        %s347 = scalar_lea.vmem %s1, %s346
      $region28: #{transformer_forward.1} parent=23 // pred_fallthru
        _
      // Predicated region
      $region29: #{transformer_forward.1} parent=23 // pred_check
        %p348 = pneg %p100
      $region30: #{transformer_forward.1} parent=23 // pred_check_branch
        %350 = sbr.rel (%p348) target = $region32
      $region31: #{transformer_forward.1} parent=23 // pred_region
        %p351 = scmp.lt.s32.totalorder %s24, 1
        %s352 = scalar_select %p351, %s24, 1
        %s353 = smul.addr %s352, 4
        %s354 = smul.addr %s353, 4
        %s355 = scalar_lea.vmem %s2, %s354
      $region32: #{transformer_forward.1} parent=23 // pred_fallthru
        _
      // Predicated region
      $region33: #{transformer_forward.1} parent=23 // pred_check
        %p356 = pneg %p126
      $region34: #{transformer_forward.1} parent=23 // pred_check_branch
        %358 = sbr.rel (%p356) target = $region36
      $region35: #{transformer_forward.1} parent=23 // pred_region
        %p359 = scmp.lt.s32.totalorder %s24, 1
        %s360 = scalar_select %p359, %s24, 1
        %s361 = smul.addr %s360, 4
        %s362 = smul.addr %s361, 4
        %s363 = scalar_lea.vmem %s3, %s362
      $region36: #{transformer_forward.1} parent=23 // pred_fallthru
        _
      // Predicated region
      $region37: #{transformer_forward.1} parent=23 // pred_check
        %p364 = pneg %p152
      $region38: #{transformer_forward.1} parent=23 // pred_check_branch
        %366 = sbr.rel (%p364) target = $region40
      $region39: #{transformer_forward.1} parent=23 // pred_region
        %p367 = scmp.lt.s32.totalorder %s24, 1
        %s368 = scalar_select %p367, %s24, 1
        %s369 = smul.addr %s368, 4
        %s370 = smul.addr %s369, 4
        %s371 = scalar_lea.vmem %s4, %s370
      $region40: #{transformer_forward.1} parent=23 // pred_fallthru
        _
      // Predicated region
      $region41: #{transformer_forward.1} parent=23 // pred_check
        %p372 = pneg %p178
      $region42: #{transformer_forward.1} parent=23 // pred_check_branch
        %374 = sbr.rel (%p372) target = $region44
      $region43: #{transformer_forward.1} parent=23 // pred_region
        %p375 = scmp.lt.s32.totalorder %s24, 1
        %s376 = scalar_select %p375, %s24, 1
        %s377 = smul.addr %s376, 4
        %s378 = smul.addr %s377, 4
        %s379 = scalar_lea.vmem %s5, %s378
      $region44: #{transformer_forward.1} parent=23 // pred_fallthru
        _
      // Predicated region
      $region45: #{transformer_forward.1} parent=23 // pred_check
        %p380 = pneg %p204
      $region46: #{transformer_forward.1} parent=23 // pred_check_branch
        %382 = sbr.rel (%p380) target = $region48
      $region47: #{transformer_forward.1} parent=23 // pred_region
        %p383 = scmp.lt.s32.totalorder %s24, 1
        %s384 = scalar_select %p383, %s24, 1
        %s385 = smul.addr %s384, 8
        %s386 = smul.addr %s385, 4
        %s387 = scalar_lea.vmem %s6, %s386
      $region48: #{transformer_forward.1} parent=23 // pred_fallthru
        _
      // Predicated region
      $region49: #{transformer_forward.1} parent=23 // pred_check
        %p388 = pneg %p230
      $region50: #{transformer_forward.1} parent=23 // pred_check_branch
        %390 = sbr.rel (%p388) target = $region52
      $region51: #{transformer_forward.1} parent=23 // pred_region
        %p391 = scmp.lt.s32.totalorder %s24, 1
        %s392 = scalar_select %p391, %s24, 1
        %s393 = smul.addr %s392, 2
        %s394 = smul.addr %s393, 8
        %s395 = scalar_lea.vmem %s7, %s394
      $region52: #{transformer_forward.1} parent=23 // pred_fallthru
        _
      // Predicated region
      $region53: #{transformer_forward.1} parent=23 // pred_check
        %p396 = pneg %p256
      $region54: #{transformer_forward.1} parent=23 // pred_check_branch
        %398 = sbr.rel (%p396) target = $region56
      $region55: #{transformer_forward.1} parent=23 // pred_region
        %p399 = scmp.lt.s32.totalorder %s24, 1
        %s400 = scalar_select %p399, %s24, 1
        %s401 = scalar_lea.vmem %s8, %s400
      $region56: #{transformer_forward.1} parent=23 // pred_fallthru
        _
    $region24: #{transformer_forward.1} parent=5 // pred_fallthru
      _
    %p402 = scmp.le.s32.totalorder 1, %s16
    %p403 = scmp.lt.s32.totalorder %s16, 3
    %p404 = pnand %p402, %p403
    %p405 = pneg %p404
    // Predicated region
    $region57: #{transformer_forward.1} parent=5 // pred_check
      _
    $region58: #{transformer_forward.1} parent=5 // pred_check_branch
      %407 = sbr.rel (%p404) target = $region60
    $region59: #{transformer_forward.1} parent=5 // pred_region
      %s408 = ssub.s32 %s16, 1
      %s409 = smul.u32 2, %s25
      %p410 = scmp.lt.s32.totalorder %s409, 1
      %s411 = scalar_select %p410, %s409, 1
      %s412 = smul.addr %s411, 8
      %s413 = scalar_lea.vmem %s0, %s412
      %p414 = pneg %p54
      %p415 = pneg %p51
      %p416 = scmp.lt.s32.totalorder %s26, 1
      %s417 = scalar_select %p416, %s26, 1
      %s418 = smul.addr %s417, 4
      %s419 = smul.addr %s418, 4
      %s420 = scalar_lea.vmem %s1, %s419
      %p421 = pneg %p80
      %p422 = pneg %p77
      %p423 = scmp.lt.s32.totalorder %s26, 1
      %s424 = scalar_select %p423, %s26, 1
      %s425 = smul.addr %s424, 4
      %s426 = smul.addr %s425, 4
      %s427 = scalar_lea.vmem %s2, %s426
      %p428 = pneg %p106
      %p429 = pneg %p103
      %p430 = scmp.lt.s32.totalorder %s26, 1
      %s431 = scalar_select %p430, %s26, 1
      %s432 = smul.addr %s431, 4
      %s433 = smul.addr %s432, 4
      %s434 = scalar_lea.vmem %s3, %s433
      %p435 = pneg %p132
      %p436 = pneg %p129
      %p437 = scmp.lt.s32.totalorder %s26, 1
      %s438 = scalar_select %p437, %s26, 1
      %s439 = smul.addr %s438, 4
      %s440 = smul.addr %s439, 4
      %s441 = scalar_lea.vmem %s4, %s440
      %p442 = pneg %p158
      %p443 = pneg %p155
      %p444 = scmp.lt.s32.totalorder %s26, 1
      %s445 = scalar_select %p444, %s26, 1
      %s446 = smul.addr %s445, 4
      %s447 = smul.addr %s446, 4
      %s448 = scalar_lea.vmem %s5, %s447
      %p449 = pneg %p184
      %p450 = pneg %p181
      %p451 = scmp.lt.s32.totalorder %s26, 1
      %s452 = scalar_select %p451, %s26, 1
      %s453 = smul.addr %s452, 8
      %s454 = smul.addr %s453, 4
      %s455 = scalar_lea.vmem %s6, %s454
      %p456 = pneg %p210
      %p457 = pneg %p207
      %p458 = scmp.lt.s32.totalorder %s26, 1
      %s459 = scalar_select %p458, %s26, 1
      %s460 = smul.addr %s459, 2
      %s461 = smul.addr %s460, 8
      %s462 = scalar_lea.vmem %s7, %s461
      %p463 = pneg %p236
      %p464 = pneg %p233
      %p465 = scmp.lt.s32.totalorder %s26, 1
      %s466 = scalar_select %p465, %s26, 1
      %s467 = scalar_lea.vmem %s8, %s466
      %p468 = pneg %p262
      %p469 = pneg %p259
      %p470 = pneg %p283
      %p471 = pneg %p280
      %p472 = pneg %p309
      %p473 = pneg %p306
      %s474 = smul.u32 2, %s25
      %p475 = scmp.lt.s32.totalorder %s474, 1
      %s476 = scalar_select %p475, %s474, 1
      %s477 = smul.addr %s476, 8
      %s478 = scalar_lea.vmem %s10, %s477
      %s479 = smul.u32 2, %s25
      %p480 = scmp.lt.s32.totalorder %s479, 1
      %s481 = scalar_select %p480, %s479, 1
      %s482 = smul.addr %s481, 8
      %s483 = scalar_lea.vmem %s0, %s482
      %s484 = smul.u32 2, %s25
      %p485 = scmp.lt.s32.totalorder %s26, 1
      %s486 = scalar_select %p485, %s26, 1
      %s487 = smul.addr %s486, 4
      %s488 = smul.addr %s487, 4
      %s489 = scalar_lea.vmem %s1, %s488
      %p490 = scmp.lt.s32.totalorder %s26, 1
      %s491 = scalar_select %p490, %s26, 1
      %s492 = smul.addr %s491, 4
      %s493 = smul.addr %s492, 4
      %s494 = scalar_lea.vmem %s2, %s493
      %p495 = scmp.lt.s32.totalorder %s26, 1
      %s496 = scalar_select %p495, %s26, 1
      %s497 = smul.addr %s496, 4
      %s498 = smul.addr %s497, 4
      %s499 = scalar_lea.vmem %s3, %s498
      %p500 = scmp.lt.s32.totalorder %s26, 1
      %s501 = scalar_select %p500, %s26, 1
      %s502 = smul.addr %s501, 4
      %s503 = smul.addr %s502, 4
      %s504 = scalar_lea.vmem %s4, %s503
      %p505 = scmp.lt.s32.totalorder %s26, 1
      %s506 = scalar_select %p505, %s26, 1
      %s507 = smul.addr %s506, 4
      %s508 = smul.addr %s507, 4
      %s509 = scalar_lea.vmem %s5, %s508
      %p510 = scmp.lt.s32.totalorder %s26, 1
      %s511 = scalar_select %p510, %s26, 1
      %s512 = smul.addr %s511, 8
      %s513 = smul.addr %s512, 4
      %s514 = scalar_lea.vmem %s6, %s513
      %p515 = scmp.lt.s32.totalorder %s26, 1
      %s516 = scalar_select %p515, %s26, 1
      %s517 = smul.addr %s516, 2
      %s518 = smul.addr %s517, 8
      %s519 = scalar_lea.vmem %s7, %s518
      %p520 = scmp.lt.s32.totalorder %s26, 1
      %s521 = scalar_select %p520, %s26, 1
      %s522 = scalar_lea.vmem %s8, %s521
      %s523 = smul.u32 2, %s25
      %p524 = scmp.lt.s32.totalorder %s523, 1
      %s525 = scalar_select %p524, %s523, 1
      %s526 = smul.addr %s525, 8
      %s527 = scalar_lea.vmem %s10, %s526
      %s528 = smul.u32 2, %s25
      %p530 = scmp.eq.s32.totalorder %s26, 0
      // Predicated region
      $region61: #{transformer_forward.1} parent=59 // pred_check
        %p531 = pneg %p530
      $region62: #{transformer_forward.1} parent=59 // pred_check_branch
        %533 = sbr.rel (%p531) target = $region64
      $region63: #{transformer_forward.1} parent=59 // pred_region
        %v534 = vld [vmem:[%s483] sm:$0xff]
        %v535 = vld [vmem:[%s483 + $0x8] sm:$0xff]
        %vm536 = vcmask 261120
        %537 = vst.msk [vmem:[#allocation2] sm:$0xff] %vm536, %v534
        %538 = vst.msk [vmem:[#allocation2 + $0x8] sm:$0xff] %vm536, %v535
      $region64: #{transformer_forward.1} parent=59 // pred_fallthru
        _
      %v539 = vld [vmem:[#allocation2] sm:$0xff]
      %v540 = vld [vmem:[#allocation2 + $0x8] sm:$0xff]
      %v541 = vpack.c.bf16 %v540, %v539
      %v542 = vld [vmem:[%s489] sm:$0xf]
      %v543 = vld [vmem:[%s489 + $0x4] sm:$0xf]
      %v544 = vld [vmem:[%s489 + $0x8] sm:$0xf]
      %v545 = vld [vmem:[%s489 + $0xc] sm:$0xf]
      %v546 = vld [vmem:[%s519] sm:$0x1]
      %v547 = vperm.slane %v546, 0
      %v552 = vunpack.c.l.b16 %v542
      %v553 = vunpack.c.l.b16 %v543
      %v554 = vunpack.c.l.b16 %v544
      %v555 = vunpack.c.l.b16 %v545
      %v556 = vpack.c.b16 %v553, %v552
      %v557 = vpack.c.b16 %v555, %v554
      %vm560 = vcmask 261120
      %v562 = vsel %vm560, %v541, 0
      %564 = vmatpush.bf16.msra.mxu0 0
      %565 = vmatpush.bf16.msra.mxu0 0
      %566 = vmatpush.bf16.msra.mxu0 0
      %567 = vmatpush.bf16.msra.mxu0 0
      %568 = vmatpush.bf16.msra.mxu0 0
      %569 = vmatpush.bf16.msra.mxu0 0
      %570 = vmatpush.bf16.msra.mxu0 %v557
      %571 = vmatpush.bf16.msra.mxu0 %v556
      %572 = vmatmul.bf16.gmra.mxu0 %v562
      %v573 = vpop.f32.mrf.mxu0
      %v574 = vadd.f32 %v547, %v573
      %v575 = vpop.f32.mrf.mxu0
      %v576 = vadd.f32 %v547, %v575
      %577 = vdwg.mxu0
      %v578 = vld [vmem:[%s494] sm:$0xf]
      %v579 = vld [vmem:[%s494 + $0x4] sm:$0xf]
      %v580 = vld [vmem:[%s494 + $0x8] sm:$0xf]
      %v581 = vld [vmem:[%s494 + $0xc] sm:$0xf]
      %v582 = vld [vmem:[%s519 + $0x1] sm:$0x1]
      %v583 = vperm.slane %v582, 0
      %v588 = vunpack.c.l.b16 %v578
      %v589 = vunpack.c.l.b16 %v579
      %v590 = vunpack.c.l.b16 %v580
      %v591 = vunpack.c.l.b16 %v581
      %v592 = vpack.c.b16 %v589, %v588
      %v593 = vpack.c.b16 %v591, %v590
      %596 = vmatpush.bf16.msra.mxu0 0
      %597 = vmatpush.bf16.msra.mxu0 0
      %598 = vmatpush.bf16.msra.mxu0 0
      %599 = vmatpush.bf16.msra.mxu0 0
      %600 = vmatpush.bf16.msra.mxu0 0
      %601 = vmatpush.bf16.msra.mxu0 0
      %602 = vmatpush.bf16.msra.mxu0 %v593
      %603 = vmatpush.bf16.msra.mxu0 %v592
      %604 = vmatmul.bf16.gmra.mxu0 %v562
      %v605 = vpop.f32.mrf.mxu0
      %v606 = vadd.f32 %v583, %v605
      %v607 = vpop.f32.mrf.mxu0
      %v608 = vadd.f32 %v583, %v607
      %609 = vdwg.mxu0
      %v610 = vld [vmem:[%s499] sm:$0xf]
      %v611 = vld [vmem:[%s499 + $0x4] sm:$0xf]
      %v612 = vld [vmem:[%s499 + $0x8] sm:$0xf]
      %v613 = vld [vmem:[%s499 + $0xc] sm:$0xf]
      %v614 = vld [vmem:[%s519 + $0x2] sm:$0x1]
      %v615 = vperm.slane %v614, 0
      %v620 = vunpack.c.l.b16 %v610
      %v621 = vunpack.c.l.b16 %v611
      %v622 = vunpack.c.l.b16 %v612
      %v623 = vunpack.c.l.b16 %v613
      %v624 = vpack.c.b16 %v621, %v620
      %v625 = vpack.c.b16 %v623, %v622
      %628 = vmatpush.bf16.msra.mxu0 0
      %629 = vmatpush.bf16.msra.mxu0 0
      %630 = vmatpush.bf16.msra.mxu0 0
      %631 = vmatpush.bf16.msra.mxu0 0
      %632 = vmatpush.bf16.msra.mxu0 0
      %633 = vmatpush.bf16.msra.mxu0 0
      %634 = vmatpush.bf16.msra.mxu0 %v625
      %635 = vmatpush.bf16.msra.mxu0 %v624
      %636 = vmatmul.bf16.gmra.mxu0 %v562
      %v637 = vpop.f32.mrf.mxu0
      %v638 = vadd.f32 %v615, %v637
      %v639 = vpop.f32.mrf.mxu0
      %v640 = vadd.f32 %v615, %v639
      %641 = vdwg.mxu0
      %v642 = vpack.c.bf16 %v574, %v574
      %v643 = vpack.c.bf16 %v576, %v576
      %v644 = vpack.c.bf16 %v606, %v606
      %v645 = vpack.c.bf16 %v608, %v608
      %v646 = vpack.c.bf16 %v638, %v638
      %v647 = vpack.c.bf16 %v640, %v640
      %vm648 = vcmask 64512
      %v650 = vsel %vm648, %v642, 0
      %v653 = vsel %vm648, %v644, 0
      %655 = vmatpush.bf16.xpose.msra.mxu0 0
      %656 = vmatpush.bf16.xpose.msra.mxu0 0
      %657 = vmatpush.bf16.xpose.msra.mxu0 0
      %658 = vmatpush.bf16.xpose.msra.mxu0 0
      %659 = vmatpush.bf16.xpose.msra.mxu0 0
      %660 = vmatpush.bf16.xpose.msra.mxu0 0
      %661 = vmatpush.bf16.xpose.msra.mxu0 0
      %662 = vmatpush.bf16.xpose.msra.mxu0 %v653
      %663 = vmatmul.bf16.gmra.mxu0 %v650
      %v664 = vpop.f32.mrf.mxu0
      %v665 = vadd.f32 0.0, %v664
      %v666 = vpop.f32.mrf.mxu0
      %667 = vdwg.mxu0
      %v669 = vsel %vm648, %v643, 0
      %v672 = vsel %vm648, %v645, 0
      %674 = vmatpush.bf16.xpose.msra.mxu0 0
      %675 = vmatpush.bf16.xpose.msra.mxu0 0
      %676 = vmatpush.bf16.xpose.msra.mxu0 0
      %677 = vmatpush.bf16.xpose.msra.mxu0 0
      %678 = vmatpush.bf16.xpose.msra.mxu0 0
      %679 = vmatpush.bf16.xpose.msra.mxu0 0
      %680 = vmatpush.bf16.xpose.msra.mxu0 0
      %681 = vmatpush.bf16.xpose.msra.mxu0 %v672
      %682 = vmatmul.bf16.gmra.mxu0 %v669
      %v683 = vpop.f32.mrf.mxu0
      %v684 = vadd.f32 0.0, %v683
      %v685 = vpop.f32.mrf.mxu0
      %686 = vdwg.mxu0
      %v687 = vsel %vm648, %v665, -inf
      %688 = vmax.xlane.f32.xlu0 %v687
      %v689 = vpop.xlane.xlu0 %688
      %v690 = vsel %vm648, %v684, -inf
      %691 = vmax.xlane.f32.xlu0 %v690
      %v692 = vpop.xlane.xlu0 %691
      %v693 = vsub.f32 %v665, %v689
      %v694 = vsub.f32 %v684, %v692
      %v695 = vmul.f32 %v693, 1.442695
      %v696 = vpow.pop %v695
      %v697 = vmul.f32 %v694, 1.442695
      %v698 = vpow.pop %v697
      %v699 = vsel %vm648, %v696, 0.0
      %700 = vadd.xlane.f32.xlu0 %v699
      %v701 = vpop.xlane.xlu0 %700
      %v702 = vsel %vm648, %v698, 0.0
      %703 = vadd.xlane.f32.xlu0 %v702
      %v704 = vpop.xlane.xlu0 %703
      %v705 = vrcp.pop %v701
      %v706 = vrcp.pop %v704
      %v707 = vmul.f32 %v696, %v705
      %v708 = vmul.f32 %v698, %v706
      %v709 = vpack.c.bf16 %v707, %v707
      %v710 = vpack.c.bf16 %v708, %v708
      %v712 = vsel %vm648, %v709, 0
      %vm714 = vcmask 1043456
      %v716 = vsel %vm714, %v646, 0
      %718 = vmatpush.bf16.msra.mxu0 0
      %719 = vmatpush.bf16.msra.mxu0 0
      %720 = vmatpush.bf16.msra.mxu0 0
      %721 = vmatpush.bf16.msra.mxu0 0
      %722 = vmatpush.bf16.msra.mxu0 0
      %723 = vmatpush.bf16.msra.mxu0 0
      %724 = vmatpush.bf16.msra.mxu0 0
      %725 = vmatpush.bf16.msra.mxu0 %v716
      %726 = vmatmul.bf16.gmra.mxu0 %v712
      %v727 = vpop.f32.mrf.mxu0
      %v728 = vadd.f32 0.0, %v727
      %v729 = vpop.f32.mrf.mxu0
      %730 = vdwg.mxu0
      %v732 = vsel %vm648, %v710, 0
      %v735 = vsel %vm714, %v647, 0
      %737 = vmatpush.bf16.msra.mxu0 0
      %738 = vmatpush.bf16.msra.mxu0 0
      %739 = vmatpush.bf16.msra.mxu0 0
      %740 = vmatpush.bf16.msra.mxu0 0
      %741 = vmatpush.bf16.msra.mxu0 0
      %742 = vmatpush.bf16.msra.mxu0 0
      %743 = vmatpush.bf16.msra.mxu0 0
      %744 = vmatpush.bf16.msra.mxu0 %v735
      %745 = vmatmul.bf16.gmra.mxu0 %v732
      %v746 = vpop.f32.mrf.mxu0
      %v747 = vadd.f32 0.0, %v746
      %v748 = vpop.f32.mrf.mxu0
      %749 = vdwg.mxu0
      %v751 = vunpack.c.l.b16 %v642
      %v752 = vpack.c.b16 %v751, %v751
      %753 = vrot.lane.b32.xlu0 %v752, 120
      %v754 = vpop.permute.xlu0 %753
      %v756 = vunpack.c.l.b16 %v644
      %v757 = vpack.c.b16 %v756, %v756
      %758 = vrot.lane.b32.xlu0 %v757, 120
      %v759 = vpop.permute.xlu0 %758
      %v761 = vsel %vm648, %v754, 0
      %v764 = vsel %vm648, %v759, 0
      %766 = vmatpush.bf16.xpose.msra.mxu0 0
      %767 = vmatpush.bf16.xpose.msra.mxu0 0
      %768 = vmatpush.bf16.xpose.msra.mxu0 0
      %769 = vmatpush.bf16.xpose.msra.mxu0 0
      %770 = vmatpush.bf16.xpose.msra.mxu0 0
      %771 = vmatpush.bf16.xpose.msra.mxu0 0
      %772 = vmatpush.bf16.xpose.msra.mxu0 0
      %773 = vmatpush.bf16.xpose.msra.mxu0 %v764
      %774 = vmatmul.bf16.gmra.mxu0 %v761
      %v775 = vpop.f32.mrf.mxu0
      %v776 = vadd.f32 0.0, %v775
      %v777 = vpop.f32.mrf.mxu0
      %778 = vdwg.mxu0
      %v780 = vunpack.c.l.b16 %v643
      %v781 = vpack.c.b16 %v780, %v780
      %782 = vrot.lane.b32.xlu0 %v781, 120
      %v783 = vpop.permute.xlu0 %782
      %v785 = vunpack.c.l.b16 %v645
      %v786 = vpack.c.b16 %v785, %v785
      %787 = vrot.lane.b32.xlu0 %v786, 120
      %v788 = vpop.permute.xlu0 %787
      %v790 = vsel %vm648, %v783, 0
      %v793 = vsel %vm648, %v788, 0
      %795 = vmatpush.bf16.xpose.msra.mxu0 0
      %796 = vmatpush.bf16.xpose.msra.mxu0 0
      %797 = vmatpush.bf16.xpose.msra.mxu0 0
      %798 = vmatpush.bf16.xpose.msra.mxu0 0
      %799 = vmatpush.bf16.xpose.msra.mxu0 0
      %800 = vmatpush.bf16.xpose.msra.mxu0 0
      %801 = vmatpush.bf16.xpose.msra.mxu0 0
      %802 = vmatpush.bf16.xpose.msra.mxu0 %v793
      %803 = vmatmul.bf16.gmra.mxu0 %v790
      %v804 = vpop.f32.mrf.mxu0
      %v805 = vadd.f32 0.0, %v804
      %v806 = vpop.f32.mrf.mxu0
      %807 = vdwg.mxu0
      %v808 = vsel %vm648, %v776, -inf
      %809 = vmax.xlane.f32.xlu0 %v808
      %v810 = vpop.xlane.xlu0 %809
      %v811 = vsel %vm648, %v805, -inf
      %812 = vmax.xlane.f32.xlu0 %v811
      %v813 = vpop.xlane.xlu0 %812
      %v814 = vsub.f32 %v776, %v810
      %v815 = vsub.f32 %v805, %v813
      %v816 = vmul.f32 %v814, 1.442695
      %v817 = vpow.pop %v816
      %v818 = vmul.f32 %v815, 1.442695
      %v819 = vpow.pop %v818
      %v820 = vsel %vm648, %v817, 0.0
      %821 = vadd.xlane.f32.xlu0 %v820
      %v822 = vpop.xlane.xlu0 %821
      %v823 = vsel %vm648, %v819, 0.0
      %824 = vadd.xlane.f32.xlu0 %v823
      %v825 = vpop.xlane.xlu0 %824
      %v826 = vrcp.pop %v822
      %v827 = vrcp.pop %v825
      %v828 = vmul.f32 %v817, %v826
      %v829 = vmul.f32 %v819, %v827
      %v830 = vpack.c.bf16 %v828, %v828
      %v831 = vpack.c.bf16 %v829, %v829
      %v833 = vunpack.c.l.b16 %v646
      %v834 = vpack.c.b16 %v833, %v833
      %835 = vrot.lane.b32.xlu0 %v834, 120
      %v836 = vpop.permute.xlu0 %835
      %v838 = vsel %vm648, %v830, 0
      %v841 = vsel %vm714, %v836, 0
      %843 = vmatpush.bf16.msra.mxu0 0
      %844 = vmatpush.bf16.msra.mxu0 0
      %845 = vmatpush.bf16.msra.mxu0 0
      %846 = vmatpush.bf16.msra.mxu0 0
      %847 = vmatpush.bf16.msra.mxu0 0
      %848 = vmatpush.bf16.msra.mxu0 0
      %849 = vmatpush.bf16.msra.mxu0 0
      %850 = vmatpush.bf16.msra.mxu0 %v841
      %851 = vmatmul.bf16.gmra.mxu0 %v838
      %v852 = vpop.f32.mrf.mxu0
      %v853 = vadd.f32 0.0, %v852
      %v854 = vpop.f32.mrf.mxu0
      %855 = vdwg.mxu0
      %v857 = vunpack.c.l.b16 %v647
      %v858 = vpack.c.b16 %v857, %v857
      %859 = vrot.lane.b32.xlu0 %v858, 120
      %v860 = vpop.permute.xlu0 %859
      %v862 = vsel %vm648, %v831, 0
      %v865 = vsel %vm714, %v860, 0
      %867 = vmatpush.bf16.msra.mxu0 0
      %868 = vmatpush.bf16.msra.mxu0 0
      %869 = vmatpush.bf16.msra.mxu0 0
      %870 = vmatpush.bf16.msra.mxu0 0
      %871 = vmatpush.bf16.msra.mxu0 0
      %872 = vmatpush.bf16.msra.mxu0 0
      %873 = vmatpush.bf16.msra.mxu0 0
      %874 = vmatpush.bf16.msra.mxu0 %v865
      %875 = vmatmul.bf16.gmra.mxu0 %v862
      %v876 = vpop.f32.mrf.mxu0
      %v877 = vadd.f32 0.0, %v876
      %v878 = vpop.f32.mrf.mxu0
      %879 = vdwg.mxu0
      %880 = vrot.lane.b32.xlu0 %v752, 112
      %v881 = vpop.permute.xlu0 %880
      %882 = vrot.lane.b32.xlu0 %v757, 112
      %v883 = vpop.permute.xlu0 %882
      %v885 = vsel %vm648, %v881, 0
      %v888 = vsel %vm648, %v883, 0
      %890 = vmatpush.bf16.xpose.msra.mxu0 0
      %891 = vmatpush.bf16.xpose.msra.mxu0 0
      %892 = vmatpush.bf16.xpose.msra.mxu0 0
      %893 = vmatpush.bf16.xpose.msra.mxu0 0
      %894 = vmatpush.bf16.xpose.msra.mxu0 0
      %895 = vmatpush.bf16.xpose.msra.mxu0 0
      %896 = vmatpush.bf16.xpose.msra.mxu0 0
      %897 = vmatpush.bf16.xpose.msra.mxu0 %v888
      %898 = vmatmul.bf16.gmra.mxu0 %v885
      %v899 = vpop.f32.mrf.mxu0
      %v900 = vadd.f32 0.0, %v899
      %v901 = vpop.f32.mrf.mxu0
      %902 = vdwg.mxu0
      %903 = vrot.lane.b32.xlu0 %v781, 112
      %v904 = vpop.permute.xlu0 %903
      %905 = vrot.lane.b32.xlu0 %v786, 112
      %v906 = vpop.permute.xlu0 %905
      %v908 = vsel %vm648, %v904, 0
      %v911 = vsel %vm648, %v906, 0
      %913 = vmatpush.bf16.xpose.msra.mxu0 0
      %914 = vmatpush.bf16.xpose.msra.mxu0 0
      %915 = vmatpush.bf16.xpose.msra.mxu0 0
      %916 = vmatpush.bf16.xpose.msra.mxu0 0
      %917 = vmatpush.bf16.xpose.msra.mxu0 0
      %918 = vmatpush.bf16.xpose.msra.mxu0 0
      %919 = vmatpush.bf16.xpose.msra.mxu0 0
      %920 = vmatpush.bf16.xpose.msra.mxu0 %v911
      %921 = vmatmul.bf16.gmra.mxu0 %v908
      %v922 = vpop.f32.mrf.mxu0
      %v923 = vadd.f32 0.0, %v922
      %v924 = vpop.f32.mrf.mxu0
      %925 = vdwg.mxu0
      %v926 = vsel %vm648, %v900, -inf
      %927 = vmax.xlane.f32.xlu0 %v926
      %v928 = vpop.xlane.xlu0 %927
      %v929 = vsel %vm648, %v923, -inf
      %930 = vmax.xlane.f32.xlu0 %v929
      %v931 = vpop.xlane.xlu0 %930
      %v932 = vsub.f32 %v900, %v928
      %v933 = vsub.f32 %v923, %v931
      %v934 = vmul.f32 %v932, 1.442695
      %v935 = vpow.pop %v934
      %v936 = vmul.f32 %v933, 1.442695
      %v937 = vpow.pop %v936
      %v938 = vsel %vm648, %v935, 0.0
      %939 = vadd.xlane.f32.xlu0 %v938
      %v940 = vpop.xlane.xlu0 %939
      %v941 = vsel %vm648, %v937, 0.0
      %942 = vadd.xlane.f32.xlu0 %v941
      %v943 = vpop.xlane.xlu0 %942
      %v944 = vrcp.pop %v940
      %v945 = vrcp.pop %v943
      %v946 = vmul.f32 %v935, %v944
      %v947 = vmul.f32 %v937, %v945
      %v948 = vpack.c.bf16 %v946, %v946
      %v949 = vpack.c.bf16 %v947, %v947
      %950 = vrot.lane.b32.xlu0 %v834, 112
      %v951 = vpop.permute.xlu0 %950
      %v953 = vsel %vm648, %v948, 0
      %v956 = vsel %vm714, %v951, 0
      %958 = vmatpush.bf16.msra.mxu0 0
      %959 = vmatpush.bf16.msra.mxu0 0
      %960 = vmatpush.bf16.msra.mxu0 0
      %961 = vmatpush.bf16.msra.mxu0 0
      %962 = vmatpush.bf16.msra.mxu0 0
      %963 = vmatpush.bf16.msra.mxu0 0
      %964 = vmatpush.bf16.msra.mxu0 0
      %965 = vmatpush.bf16.msra.mxu0 %v956
      %966 = vmatmul.bf16.gmra.mxu0 %v953
      %v967 = vpop.f32.mrf.mxu0
      %v968 = vadd.f32 0.0, %v967
      %v969 = vpop.f32.mrf.mxu0
      %970 = vdwg.mxu0
      %971 = vrot.lane.b32.xlu0 %v858, 112
      %v972 = vpop.permute.xlu0 %971
      %v974 = vsel %vm648, %v949, 0
      %v977 = vsel %vm714, %v972, 0
      %979 = vmatpush.bf16.msra.mxu0 0
      %980 = vmatpush.bf16.msra.mxu0 0
      %981 = vmatpush.bf16.msra.mxu0 0
      %982 = vmatpush.bf16.msra.mxu0 0
      %983 = vmatpush.bf16.msra.mxu0 0
      %984 = vmatpush.bf16.msra.mxu0 0
      %985 = vmatpush.bf16.msra.mxu0 0
      %986 = vmatpush.bf16.msra.mxu0 %v977
      %987 = vmatmul.bf16.gmra.mxu0 %v974
      %v988 = vpop.f32.mrf.mxu0
      %v989 = vadd.f32 0.0, %v988
      %v990 = vpop.f32.mrf.mxu0
      %991 = vdwg.mxu0
      %992 = vrot.lane.b32.xlu0 %v752, 104
      %v993 = vpop.permute.xlu0 %992
      %994 = vrot.lane.b32.xlu0 %v757, 104
      %v995 = vpop.permute.xlu0 %994
      %v997 = vsel %vm648, %v993, 0
      %v1000 = vsel %vm648, %v995, 0
      %1002 = vmatpush.bf16.xpose.msra.mxu0 0
      %1003 = vmatpush.bf16.xpose.msra.mxu0 0
      %1004 = vmatpush.bf16.xpose.msra.mxu0 0
      %1005 = vmatpush.bf16.xpose.msra.mxu0 0
      %1006 = vmatpush.bf16.xpose.msra.mxu0 0
      %1007 = vmatpush.bf16.xpose.msra.mxu0 0
      %1008 = vmatpush.bf16.xpose.msra.mxu0 0
      %1009 = vmatpush.bf16.xpose.msra.mxu0 %v1000
      %1010 = vmatmul.bf16.gmra.mxu0 %v997
      %v1011 = vpop.f32.mrf.mxu0
      %v1012 = vadd.f32 0.0, %v1011
      %v1013 = vpop.f32.mrf.mxu0
      %1014 = vdwg.mxu0
      %1015 = vrot.lane.b32.xlu0 %v781, 104
      %v1016 = vpop.permute.xlu0 %1015
      %1017 = vrot.lane.b32.xlu0 %v786, 104
      %v1018 = vpop.permute.xlu0 %1017
      %v1020 = vsel %vm648, %v1016, 0
      %v1023 = vsel %vm648, %v1018, 0
      %1025 = vmatpush.bf16.xpose.msra.mxu0 0
      %1026 = vmatpush.bf16.xpose.msra.mxu0 0
      %1027 = vmatpush.bf16.xpose.msra.mxu0 0
      %1028 = vmatpush.bf16.xpose.msra.mxu0 0
      %1029 = vmatpush.bf16.xpose.msra.mxu0 0
      %1030 = vmatpush.bf16.xpose.msra.mxu0 0
      %1031 = vmatpush.bf16.xpose.msra.mxu0 0
      %1032 = vmatpush.bf16.xpose.msra.mxu0 %v1023
      %1033 = vmatmul.bf16.gmra.mxu0 %v1020
      %v1034 = vpop.f32.mrf.mxu0
      %v1035 = vadd.f32 0.0, %v1034
      %v1036 = vpop.f32.mrf.mxu0
      %1037 = vdwg.mxu0
      %v1038 = vsel %vm648, %v1012, -inf
      %1039 = vmax.xlane.f32.xlu0 %v1038
      %v1040 = vpop.xlane.xlu0 %1039
      %v1041 = vsel %vm648, %v1035, -inf
      %1042 = vmax.xlane.f32.xlu0 %v1041
      %v1043 = vpop.xlane.xlu0 %1042
      %v1044 = vsub.f32 %v1012, %v1040
      %v1045 = vsub.f32 %v1035, %v1043
      %v1046 = vmul.f32 %v1044, 1.442695
      %v1047 = vpow.pop %v1046
      %v1048 = vmul.f32 %v1045, 1.442695
      %v1049 = vpow.pop %v1048
      %v1050 = vsel %vm648, %v1047, 0.0
      %1051 = vadd.xlane.f32.xlu0 %v1050
      %v1052 = vpop.xlane.xlu0 %1051
      %v1053 = vsel %vm648, %v1049, 0.0
      %1054 = vadd.xlane.f32.xlu0 %v1053
      %v1055 = vpop.xlane.xlu0 %1054
      %v1056 = vrcp.pop %v1052
      %v1057 = vrcp.pop %v1055
      %v1058 = vmul.f32 %v1047, %v1056
      %v1059 = vmul.f32 %v1049, %v1057
      %v1060 = vpack.c.bf16 %v1058, %v1058
      %v1061 = vpack.c.bf16 %v1059, %v1059
      %1062 = vrot.lane.b32.xlu0 %v834, 104
      %v1063 = vpop.permute.xlu0 %1062
      %v1065 = vsel %vm648, %v1060, 0
      %v1068 = vsel %vm714, %v1063, 0
      %1070 = vmatpush.bf16.msra.mxu0 0
      %1071 = vmatpush.bf16.msra.mxu0 0
      %1072 = vmatpush.bf16.msra.mxu0 0
      %1073 = vmatpush.bf16.msra.mxu0 0
      %1074 = vmatpush.bf16.msra.mxu0 0
      %1075 = vmatpush.bf16.msra.mxu0 0
      %1076 = vmatpush.bf16.msra.mxu0 0
      %1077 = vmatpush.bf16.msra.mxu0 %v1068
      %1078 = vmatmul.bf16.gmra.mxu0 %v1065
      %v1079 = vpop.f32.mrf.mxu0
      %v1080 = vadd.f32 0.0, %v1079
      %v1081 = vpop.f32.mrf.mxu0
      %1082 = vdwg.mxu0
      %1083 = vrot.lane.b32.xlu0 %v858, 104
      %v1084 = vpop.permute.xlu0 %1083
      %v1086 = vsel %vm648, %v1061, 0
      %v1089 = vsel %vm714, %v1084, 0
      %1091 = vmatpush.bf16.msra.mxu0 0
      %1092 = vmatpush.bf16.msra.mxu0 0
      %1093 = vmatpush.bf16.msra.mxu0 0
      %1094 = vmatpush.bf16.msra.mxu0 0
      %1095 = vmatpush.bf16.msra.mxu0 0
      %1096 = vmatpush.bf16.msra.mxu0 0
      %1097 = vmatpush.bf16.msra.mxu0 0
      %1098 = vmatpush.bf16.msra.mxu0 %v1089
      %1099 = vmatmul.bf16.gmra.mxu0 %v1086
      %v1100 = vpop.f32.mrf.mxu0
      %v1101 = vadd.f32 0.0, %v1100
      %v1102 = vpop.f32.mrf.mxu0
      %1103 = vdwg.mxu0
      %1106 = vrot.lane.b32.xlu0 %v853, 8
      %v1107 = vpop.permute.xlu0 %1106
      %1108 = vrot.lane.b32.xlu0 %v877, 8
      %v1109 = vpop.permute.xlu0 %1108
      %1114 = vrot.lane.b32.xlu0 %v968, 16
      %v1115 = vpop.permute.xlu0 %1114
      %1116 = vrot.lane.b32.xlu0 %v989, 16
      %v1117 = vpop.permute.xlu0 %1116
      %1122 = vrot.lane.b32.xlu0 %v1080, 24
      %v1123 = vpop.permute.xlu0 %1122
      %1124 = vrot.lane.b32.xlu0 %v1101, 24
      %v1125 = vpop.permute.xlu0 %1124
      %v1128 = vsel %vm648, %v728, %v1107
      %v1129 = vsel %vm648, %v747, %v1109
      %vm1130 = vcmask 130048
      %v1131 = vsel %vm1130, %v1128, %v1115
      %v1132 = vsel %vm1130, %v1129, %v1117
      %vm1133 = vcmask 195584
      %v1134 = vsel %vm1133, %v1131, %v1123
      %v1135 = vsel %vm1133, %v1132, %v1125
      %v1136 = vpack.c.bf16 %v1135, %v1134
      %v1137 = vld [vmem:[%s504] sm:$0xf]
      %v1138 = vld [vmem:[%s504 + $0x4] sm:$0xf]
      %v1139 = vld [vmem:[%s504 + $0x8] sm:$0xf]
      %v1140 = vld [vmem:[%s504 + $0xc] sm:$0xf]
      %v1141 = vld [vmem:[%s519 + $0x3] sm:$0x1]
      %v1142 = vperm.slane %v1141, 0
      %v1147 = vunpack.c.l.b16 %v1137
      %v1148 = vunpack.c.l.b16 %v1138
      %v1149 = vunpack.c.l.b16 %v1139
      %v1150 = vunpack.c.l.b16 %v1140
      %v1151 = vpack.c.b16 %v1148, %v1147
      %v1152 = vpack.c.b16 %v1150, %v1149
      %v1156 = vsel %vm560, %v1136, 0
      %1158 = vmatpush.bf16.msra.mxu0 0
      %1159 = vmatpush.bf16.msra.mxu0 0
      %1160 = vmatpush.bf16.msra.mxu0 0
      %1161 = vmatpush.bf16.msra.mxu0 0
      %1162 = vmatpush.bf16.msra.mxu0 0
      %1163 = vmatpush.bf16.msra.mxu0 0
      %1164 = vmatpush.bf16.msra.mxu0 %v1152
      %1165 = vmatpush.bf16.msra.mxu0 %v1151
      %1166 = vmatmul.bf16.gmra.mxu0 %v1156
      %v1167 = vpop.f32.mrf.mxu0
      %v1168 = vadd.f32 %v1142, %v1167
      %v1169 = vpop.f32.mrf.mxu0
      %v1170 = vadd.f32 %v1142, %v1169
      %1171 = vdwg.mxu0
      %v1172 = vadd.f32 %v539, %v1168
      %v1173 = vadd.f32 %v540, %v1170
      %v1174 = vld [vmem:[%s519 + $0x5] sm:$0x1]
      %v1175 = vld [vmem:[%s519 + $0x6] sm:$0x1]
      %v1176 = vsel %vm560, %v1172, 0.0
      %1177 = vadd.xlane.f32.xlu0 %v1176
      %v1178 = vpop.xlane.xlu0 %1177
      %v1179 = vsel %vm560, %v1173, 0.0
      %1180 = vadd.xlane.f32.xlu0 %v1179
      %v1181 = vpop.xlane.xlu0 %1180
      %v1182 = vrcp.pop 32.0
      %v1183 = vmul.f32 32.0, %v1182
      %v1184 = vsub.f32 1.0, %v1183
      %v1185 = vmul.f32 %v1182, %v1184
      %v1186 = vadd.f32 %v1182, %v1185
      %vm1187 = vweird.f32 %v1182
      %v1188 = vsel %vm1187, %v1182, %v1186
      %v1189 = vmul.f32 %v1178, %v1188
      %v1190 = vmul.f32 %v1181, %v1188
      %v1191 = vsub.f32 %v1172, %v1189
      %v1192 = vsub.f32 %v1173, %v1190
      %v1193 = vmul.f32 %v1191, %v1191
      %v1194 = vmul.f32 %v1192, %v1192
      %v1195 = vsel %vm560, %v1193, 0.0
      %1196 = vadd.xlane.f32.xlu0 %v1195
      %v1197 = vpop.xlane.xlu0 %1196
      %v1198 = vsel %vm560, %v1194, 0.0
      %1199 = vadd.xlane.f32.xlu0 %v1198
      %v1200 = vpop.xlane.xlu0 %1199
      %v1201 = vmul.f32 %v1197, %v1188
      %v1202 = vmul.f32 %v1200, %v1188
      %v1203 = vadd.f32 %v1201, 1e-05
      %v1204 = vadd.f32 %v1202, 1e-05
      %v1205 = vrsqrt.pop %v1203
      %v1206 = vmul.f32 %v1205, %v1203
      %v1207 = vmul.f32 %v1206, %v1205
      %v1208 = vmul.f32 0.5, %v1207
      %v1209 = vsub.f32 1.5, %v1208
      %v1210 = vmul.f32 %v1205, %v1209
      %vm1211 = vweird.f32 %v1203
      %vm1212 = vweird.f32 %v1205
      %vm1213 = vmor %vm1211, %vm1212
      %v1214 = vsel %vm1213, %v1205, %v1210
      %v1215 = vrsqrt.pop %v1204
      %v1216 = vmul.f32 %v1215, %v1204
      %v1217 = vmul.f32 %v1216, %v1215
      %v1218 = vmul.f32 0.5, %v1217
      %v1219 = vsub.f32 1.5, %v1218
      %v1220 = vmul.f32 %v1215, %v1219
      %vm1221 = vweird.f32 %v1204
      %vm1222 = vweird.f32 %v1215
      %vm1223 = vmor %vm1221, %vm1222
      %v1224 = vsel %vm1223, %v1215, %v1220
      %v1225 = vmul.f32 %v1191, %v1214
      %v1226 = vmul.f32 %v1192, %v1224
      %v1227 = vperm.slane %v1174, 0
      %v1228 = vmul.f32 %v1225, %v1227
      %v1229 = vmul.f32 %v1226, %v1227
      %v1230 = vperm.slane %v1175, 0
      %v1231 = vadd.f32 %v1228, %v1230
      %v1232 = vadd.f32 %v1229, %v1230
      %v1233 = vpack.c.bf16 %v1232, %v1231
      %v1234 = vld [vmem:[%s509] sm:$0xf]
      %v1235 = vld [vmem:[%s509 + $0x4] sm:$0xf]
      %v1236 = vld [vmem:[%s509 + $0x8] sm:$0xf]
      %v1237 = vld [vmem:[%s509 + $0xc] sm:$0xf]
      %v1238 = vld [vmem:[%s522] sm:$0x1]
      %v1240 = vperm.slane %v1238, 0
      %v1246 = vunpack.c.l.b16 %v1234
      %v1247 = vunpack.c.l.b16 %v1235
      %v1248 = vunpack.c.l.b16 %v1236
      %v1249 = vunpack.c.l.b16 %v1237
      %v1250 = vpack.c.b16 %v1247, %v1246
      %v1251 = vpack.c.b16 %v1249, %v1248
      %v1255 = vsel %vm560, %v1233, 0
      %1257 = vmatpush.bf16.msra.mxu0 0
      %1258 = vmatpush.bf16.msra.mxu0 0
      %1259 = vmatpush.bf16.msra.mxu0 0
      %1260 = vmatpush.bf16.msra.mxu0 0
      %1261 = vmatpush.bf16.msra.mxu0 0
      %1262 = vmatpush.bf16.msra.mxu0 0
      %1263 = vmatpush.bf16.msra.mxu0 %v1251
      %1264 = vmatpush.bf16.msra.mxu0 %v1250
      %1265 = vmatmul.bf16.gmra.mxu0 %v1255
      %v1266 = vpop.f32.mrf.mxu0
      %v1267 = vadd.f32 %v1240, %v1266
      %v1268 = vpop.f32.mrf.mxu0
      %v1269 = vadd.f32 %v1240, %v1268
      %1270 = vdwg.mxu0
      %v1271 = vmax.f32 %v1267, 0.0
      %v1272 = vmax.f32 %v1269, 0.0
      %v1273 = vpack.c.bf16 %v1272, %v1271
      %v1274 = vld [vmem:[%s514] sm:$0xf]
      %v1275 = vld [vmem:[%s514 + $0x4] sm:$0xf]
      %v1276 = vld [vmem:[%s514 + $0x8] sm:$0xf]
      %v1277 = vld [vmem:[%s514 + $0xc] sm:$0xf]
      %v1278 = vld [vmem:[%s514 + $0x10] sm:$0xf]
      %v1279 = vld [vmem:[%s514 + $0x14] sm:$0xf]
      %v1280 = vld [vmem:[%s514 + $0x18] sm:$0xf]
      %v1281 = vld [vmem:[%s514 + $0x1c] sm:$0xf]
      %v1282 = vld [vmem:[%s519 + $0x4] sm:$0x1]
      %v1283 = vperm.slane %v1282, 0
      %v1292 = vunpack.c.l.b16 %v1274
      %v1293 = vunpack.c.l.b16 %v1275
      %v1294 = vunpack.c.l.b16 %v1276
      %v1295 = vunpack.c.l.b16 %v1277
      %v1296 = vunpack.c.l.b16 %v1278
      %v1297 = vunpack.c.l.b16 %v1279
      %v1298 = vunpack.c.l.b16 %v1280
      %v1299 = vunpack.c.l.b16 %v1281
      %v1300 = vpack.c.b16 %v1293, %v1292
      %v1301 = vpack.c.b16 %v1295, %v1294
      %v1302 = vpack.c.b16 %v1297, %v1296
      %v1303 = vpack.c.b16 %v1299, %v1298
      %vm1308 = vcmask 523264
      %v1310 = vsel %vm1308, %v1273, 0
      %1312 = vmatpush.bf16.msra.mxu0 0
      %1313 = vmatpush.bf16.msra.mxu0 0
      %1314 = vmatpush.bf16.msra.mxu0 0
      %1315 = vmatpush.bf16.msra.mxu0 0
      %1316 = vmatpush.bf16.msra.mxu0 %v1303
      %1317 = vmatpush.bf16.msra.mxu0 %v1302
      %1318 = vmatpush.bf16.msra.mxu0 %v1301
      %1319 = vmatpush.bf16.msra.mxu0 %v1300
      %1320 = vmatmul.bf16.gmra.mxu0 %v1310
      %v1321 = vpop.f32.mrf.mxu0
      %v1322 = vadd.f32 %v1283, %v1321
      %v1323 = vpop.f32.mrf.mxu0
      %v1324 = vadd.f32 %v1283, %v1323
      %1325 = vdwg.mxu0
      %v1326 = vadd.f32 %v1231, %v1322
      %v1327 = vadd.f32 %v1232, %v1324
      %v1328 = vld [vmem:[%s519 + $0x7] sm:$0x1]
      %v1329 = vld [vmem:[%s519 + $0x8] sm:$0x1]
      %v1330 = vsel %vm560, %v1326, 0.0
      %1331 = vadd.xlane.f32.xlu0 %v1330
      %v1332 = vpop.xlane.xlu0 %1331
      %v1333 = vsel %vm560, %v1327, 0.0
      %1334 = vadd.xlane.f32.xlu0 %v1333
      %v1335 = vpop.xlane.xlu0 %1334
      %v1336 = vmul.f32 %v1332, %v1188
      %v1337 = vmul.f32 %v1335, %v1188
      %v1338 = vsub.f32 %v1326, %v1336
      %v1339 = vsub.f32 %v1327, %v1337
      %v1340 = vmul.f32 %v1338, %v1338
      %v1341 = vmul.f32 %v1339, %v1339
      %v1342 = vsel %vm560, %v1340, 0.0
      %1343 = vadd.xlane.f32.xlu0 %v1342
      %v1344 = vpop.xlane.xlu0 %1343
      %v1345 = vsel %vm560, %v1341, 0.0
      %1346 = vadd.xlane.f32.xlu0 %v1345
      %v1347 = vpop.xlane.xlu0 %1346
      %v1348 = vmul.f32 %v1344, %v1188
      %v1349 = vmul.f32 %v1347, %v1188
      %v1350 = vadd.f32 %v1348, 1e-05
      %v1351 = vadd.f32 %v1349, 1e-05
      %v1352 = vrsqrt.pop %v1350
      %v1353 = vmul.f32 %v1352, %v1350
      %v1354 = vmul.f32 %v1353, %v1352
      %v1355 = vmul.f32 0.5, %v1354
      %v1356 = vsub.f32 1.5, %v1355
      %v1357 = vmul.f32 %v1352, %v1356
      %vm1358 = vweird.f32 %v1350
      %vm1359 = vweird.f32 %v1352
      %vm1360 = vmor %vm1358, %vm1359
      %v1361 = vsel %vm1360, %v1352, %v1357
      %v1362 = vrsqrt.pop %v1351
      %v1363 = vmul.f32 %v1362, %v1351
      %v1364 = vmul.f32 %v1363, %v1362
      %v1365 = vmul.f32 0.5, %v1364
      %v1366 = vsub.f32 1.5, %v1365
      %v1367 = vmul.f32 %v1362, %v1366
      %vm1368 = vweird.f32 %v1351
      %vm1369 = vweird.f32 %v1362
      %vm1370 = vmor %vm1368, %vm1369
      %v1371 = vsel %vm1370, %v1362, %v1367
      %v1372 = vmul.f32 %v1338, %v1361
      %v1373 = vmul.f32 %v1339, %v1371
      %v1374 = vperm.slane %v1328, 0
      %v1375 = vmul.f32 %v1372, %v1374
      %v1376 = vmul.f32 %v1373, %v1374
      %v1377 = vperm.slane %v1329, 0
      %v1378 = vadd.f32 %v1375, %v1377
      %v1379 = vadd.f32 %v1376, %v1377
      %1380 = vst.msk [vmem:[#allocation2] sm:$0xff] %vm560, %v1378
      %1381 = vst.msk [vmem:[#allocation2 + $0x8] sm:$0xff] %vm560, %v1379
      %p1382 = scmp.eq.s32.totalorder %s26, 1
      // Predicated region
      $region65: #{transformer_forward.1} parent=59 // pred_check
        %p1383 = pneg %p1382
      $region66: #{transformer_forward.1} parent=59 // pred_check_branch
        %1385 = sbr.rel (%p1383) target = $region68
      $region67: #{transformer_forward.1} parent=59 // pred_region
        %v1386 = vld [vmem:[%s9] sm:$0x1]
        %v1387 = vld [vmem:[%s9 + $0x1] sm:$0x1]
        %v1388 = vsel %vm560, %v1378, 0.0
        %1389 = vadd.xlane.f32.xlu0 %v1388
        %v1390 = vpop.xlane.xlu0 %1389
        %v1391 = vsel %vm560, %v1379, 0.0
        %1392 = vadd.xlane.f32.xlu0 %v1391
        %v1393 = vpop.xlane.xlu0 %1392
        %v1394 = vmul.f32 %v1390, %v1188
        %v1395 = vmul.f32 %v1393, %v1188
        %v1396 = vsub.f32 %v1378, %v1394
        %v1397 = vsub.f32 %v1379, %v1395
        %v1398 = vmul.f32 %v1396, %v1396
        %v1399 = vmul.f32 %v1397, %v1397
        %v1400 = vsel %vm560, %v1398, 0.0
        %1401 = vadd.xlane.f32.xlu0 %v1400
        %v1402 = vpop.xlane.xlu0 %1401
        %v1403 = vsel %vm560, %v1399, 0.0
        %1404 = vadd.xlane.f32.xlu0 %v1403
        %v1405 = vpop.xlane.xlu0 %1404
        %v1406 = vmul.f32 %v1402, %v1188
        %v1407 = vmul.f32 %v1405, %v1188
        %v1408 = vadd.f32 %v1406, 1e-05
        %v1409 = vadd.f32 %v1407, 1e-05
        %v1410 = vrsqrt.pop %v1408
        %v1411 = vmul.f32 %v1410, %v1408
        %v1412 = vmul.f32 %v1411, %v1410
        %v1413 = vmul.f32 0.5, %v1412
        %v1414 = vsub.f32 1.5, %v1413
        %v1415 = vmul.f32 %v1410, %v1414
        %vm1416 = vweird.f32 %v1408
        %vm1417 = vweird.f32 %v1410
        %vm1418 = vmor %vm1416, %vm1417
        %v1419 = vsel %vm1418, %v1410, %v1415
        %v1420 = vrsqrt.pop %v1409
        %v1421 = vmul.f32 %v1420, %v1409
        %v1422 = vmul.f32 %v1421, %v1420
        %v1423 = vmul.f32 0.5, %v1422
        %v1424 = vsub.f32 1.5, %v1423
        %v1425 = vmul.f32 %v1420, %v1424
        %vm1426 = vweird.f32 %v1409
        %vm1427 = vweird.f32 %v1420
        %vm1428 = vmor %vm1426, %vm1427
        %v1429 = vsel %vm1428, %v1420, %v1425
        %v1430 = vmul.f32 %v1396, %v1419
        %v1431 = vmul.f32 %v1397, %v1429
        %v1432 = vperm.slane %v1386, 0
        %v1433 = vmul.f32 %v1430, %v1432
        %v1434 = vmul.f32 %v1431, %v1432
        %v1435 = vperm.slane %v1387, 0
        %v1436 = vadd.f32 %v1433, %v1435
        %v1437 = vadd.f32 %v1434, %v1435
        %1438 = vst.msk [vmem:[%s527] sm:$0xff] %vm560, %v1436
        %1439 = vst.msk [vmem:[%s527 + $0x8] sm:$0xff] %vm560, %v1437
      $region68: #{transformer_forward.1} parent=59 // pred_fallthru
        _
      %s1440 = smul.u32 2, %s25
      %p1441 = scmp.lt.s32.totalorder %s1440, 1
      %s1442 = scalar_select %p1441, %s1440, 1
      %s1443 = smul.addr %s1442, 8
      %s1444 = scalar_lea.vmem %s10, %s1443
      // Predicated region
      $region69: #{transformer_forward.1} parent=59 // pred_check
        %p1445 = pneg %p306
      $region70: #{transformer_forward.1} parent=59 // pred_check_branch
        %1447 = sbr.rel (%p1445) target = $region72
      $region71: #{transformer_forward.1} parent=59 // pred_region
        %s1448 = smul.u32 2, %s25
      $region72: #{transformer_forward.1} parent=59 // pred_fallthru
        _
      // Predicated region
      $region73: #{transformer_forward.1} parent=59 // pred_check
        %p1449 = pneg %p306
      $region74: #{transformer_forward.1} parent=59 // pred_check_branch
        %1451 = sbr.rel (%p1449) target = $region76
      $region75: #{transformer_forward.1} parent=59 // pred_region
        %s1452 = smul.u32 2, %s25
        %p1453 = scmp.lt.s32.totalorder %s1452, 1
        %s1454 = scalar_select %p1453, %s1452, 1
        %s1455 = smul.addr %s1454, 8
        %s1456 = scalar_lea.vmem %s10, %s1455
      $region76: #{transformer_forward.1} parent=59 // pred_fallthru
        _
    $region60: #{transformer_forward.1} parent=5 // pred_fallthru
      _
    %p1457 = scmp.le.s32.totalorder 2, %s16
    // Predicated region
    $region77: #{transformer_forward.1} parent=5 // pred_check
      %p1458 = pneg %p1457
    $region78: #{transformer_forward.1} parent=5 // pred_check_branch
      %1460 = sbr.rel (%p1458) target = $region80
    $region79: #{transformer_forward.1} parent=5 // pred_region
      %s1461 = ssub.s32 %s16, 2
    $region80: #{transformer_forward.1} parent=5 // pred_fallthru
      _
  $region6: #{transformer_forward.1} parent=0 // loop_footer
    %s20 = sadd.s32 1, %s16
  $region7: #{transformer_forward.1} parent=0 // loop_footer_branch
    %15 = sbr.rel target = $region3
  $region8: #{transformer_forward.1} parent=0 // loop_exit
    _

</llo_original>
